<compile_context>
chip_gen: v7x
topology: tpu7x:2x2x1
jax: 0.10.0
libtpu: 0.0.40
codegen_flags: <defaults>
</compile_context>

<pallas_src>
import jax
import jax.numpy as jnp
from jax.experimental import pallas as pl
from jax.experimental.pallas import tpu as pltpu


def _lstm_classifier_kernel(x_ref, wih_ref, whh_ref, b_ref, wfc_ref, bfc_ref,
                            out_ref):
    Bb, S, Dp = x_ref.shape          # batch block, seq len, padded feature dim
    H = whh_ref.shape[0]

    # ---- Hoisted input projection: ONE bf16 matmul for all timesteps. ----
    # (Bb*S, Dp) @ (Dp, 4H) -> f32, fused (b_ih + b_hh) bias added once.
    x_flat = x_ref[...].reshape(Bb * S, Dp)                      # free reshape
    xproj = jnp.dot(x_flat, wih_ref[...],
                    preferred_element_type=jnp.float32) + b_ref[...]
    xproj = xproj.reshape(Bb, S, 4 * H)                          # (Bb, S, 4H) f32

    whh = whh_ref[...]                                           # (H, 4H) bf16

    h = jnp.zeros((Bb, H), jnp.float32)
    c = jnp.zeros((Bb, H), jnp.float32)

    # ---- Serial recurrence, fully unrolled (S is small & static). ----
    # TODO(synk): for large S, spill xproj to a VMEM scratch + lax.fori_loop to
    # bound vreg live ranges (not needed at S=8).
    for t in range(S):
        gates = xproj[:, t, :] + jnp.dot(h.astype(jnp.bfloat16), whh,
                                         preferred_element_type=jnp.float32)
        g_pre = gates[:, 2 * H:3 * H]          # slice g before the sigmoid push
        sig = jax.nn.sigmoid(gates)            # one full-width EUP push
        i_g = sig[:, 0 * H:1 * H]
        f_g = sig[:, 1 * H:2 * H]
        o_g = sig[:, 3 * H:4 * H]
        g_g = jnp.tanh(g_pre)

        c = f_g * c + i_g * g_g
        h = o_g * jnp.tanh(c)

    # ---- Final FC (H -> 1) + sigmoid, emitted lane-dense as (1, Bb). ----
    logits = jax.lax.dot_general(wfc_ref[...], h, (((1,), (1,)), ((), ())),
                                 preferred_element_type=jnp.float32)  # (1, Bb)
    out_ref[...] = jax.nn.sigmoid(logits + bfc_ref[...])


def lstm_classifier_forward(x_bsd, params):
    """x_bsd: (B, S, D) float32, batch_first like PyTorch.  Returns (B, 1)."""
    B, S, D = x_bsd.shape
    wih_t = params["wih_t"]            # (D, 4H) f32
    whh_t = params["whh_t"]            # (H, 4H) f32
    b = params["b"]                    # (1, 4H) f32  (= b_ih + b_hh)
    wfc = params["wfc_row"]            # (1, H)  f32
    bfc = params["bfc"]                # (1, 1)  f32
    H = whh_t.shape[0]

    # Zero-pad the feature dim to a 128-lane multiple (zeros add nothing).
    Dp = ((D + 127) // 128) * 128
    if Dp != D:
        x_bsd = jnp.pad(x_bsd, ((0, 0), (0, 0), (0, Dp - D)))
        wih_t = jnp.pad(wih_t, ((0, Dp - D), (0, 0)))

    # bf16 MXU operands; accumulation stays f32 inside the kernel.
    x_bf = x_bsd.astype(jnp.bfloat16)          # batch-major, no host transpose
    wih_bf = wih_t.astype(jnp.bfloat16)
    whh_bf = whh_t.astype(jnp.bfloat16)

    # Independent sequences -> "parallel" batch-block axis (v7x: both TCs once
    # B is a multiple of 128).  At small B this is a single block.
    B_blk = 128 if (B % 128 == 0) else B
    grid = (B // B_blk,)

    out = pl.pallas_call(
        _lstm_classifier_kernel,
        out_shape=jax.ShapeDtypeStruct((1, B), jnp.float32),
        grid=grid,
        in_specs=[
            pl.BlockSpec((B_blk, S, Dp), lambda i: (i, 0, 0)),   # x (bf16)
            pl.BlockSpec((Dp, 4 * H), lambda i: (0, 0)),         # W_ih^T (bf16)
            pl.BlockSpec((H, 4 * H), lambda i: (0, 0)),          # W_hh^T (bf16)
            pl.BlockSpec((1, 4 * H), lambda i: (0, 0)),          # fused bias (f32)
            pl.BlockSpec((1, H), lambda i: (0, 0)),              # fc weight row
            pl.BlockSpec((1, 1), lambda i: (0, 0)),              # fc bias
        ],
        out_specs=pl.BlockSpec((1, B_blk), lambda i: (0, i)),    # lane-dense
        compiler_params=pltpu.CompilerParams(
            dimension_semantics=("parallel",)),
    )(x_bf, wih_bf, whh_bf, b, wfc, bfc)

    return out.reshape(B, 1)


def reference_forward(x_bsd, params):
    """Pure-JAX f32 reference (mirrors PyTorch nn.LSTM + Linear + Sigmoid)."""
    B, S, D = x_bsd.shape
    H = params["whh_t"].shape[0]
    h = jnp.zeros((B, H), jnp.float32)
    c = jnp.zeros((B, H), jnp.float32)
    for t in range(S):
        gates = x_bsd[:, t, :] @ params["wih_t"] + h @ params["whh_t"] + params["b"]
        i = jax.nn.sigmoid(gates[:, 0 * H:1 * H])
        f = jax.nn.sigmoid(gates[:, 1 * H:2 * H])
        g = jnp.tanh(gates[:, 2 * H:3 * H])
        o = jax.nn.sigmoid(gates[:, 3 * H:4 * H])
        c = f * c + i * g
        h = o * jnp.tanh(c)
    return jax.nn.sigmoid(h @ params["wfc_row"].T + params["bfc"])


def init_params(key, input_dim, hidden_dim, output_dim=1):
    """Deterministic init, same shapes/uniform range as PyTorch nn.LSTM / nn.Linear."""
    k = jax.random.split(key, 7)
    bound = 1.0 / jnp.sqrt(hidden_dim)
    w_ih = jax.random.uniform(k[0], (4 * hidden_dim, input_dim), jnp.float32, -bound, bound)
    w_hh = jax.random.uniform(k[1], (4 * hidden_dim, hidden_dim), jnp.float32, -bound, bound)
    b_ih = jax.random.uniform(k[2], (4 * hidden_dim,), jnp.float32, -bound, bound)
    b_hh = jax.random.uniform(k[3], (4 * hidden_dim,), jnp.float32, -bound, bound)
    w_fc = jax.random.uniform(k[4], (output_dim, hidden_dim), jnp.float32, -bound, bound)
    b_fc = jax.random.uniform(k[5], (output_dim,), jnp.float32, -bound, bound)
    return {
        "wih_t": w_ih.T,                       # (D, 4H)
        "whh_t": w_hh.T,                       # (H, 4H)
        "b": (b_ih + b_hh).reshape(1, -1),     # (1, 4H)  fused bias
        "wfc_row": w_fc,                       # (1, H)
        "bfc": b_fc.reshape(1, 1),             # (1, 1)
    }


if __name__ == "__main__":
    # Small shapes consistent with the module: input_dim=100 (TruncatedSVD
    # n_components), hidden_dim=32, output_dim=1, batch_first sequences.
    B, S, D, H = 8, 8, 100, 32

    key = jax.random.PRNGKey(0)
    kx, kp = jax.random.split(key)
    x = jax.random.normal(kx, (B, S, D), jnp.float32)   # (batch, seq, input_dim)
    params = init_params(kp, D, H, 1)

    out = lstm_classifier_forward(x, params)
    out = jax.block_until_ready(out)

    ref = reference_forward(x, params)
    assert out.shape == (B, 1)
    # bf16 MXU operands -> loosened tolerance vs. the f32 reference.
    assert jnp.allclose(out, ref, atol=2e-2, rtol=2e-2), (out, ref)

    print("KERNEL_OK")
</pallas_src>

<mosaic_0001>
module attributes {stable_mosaic.version = 11 : i64} {
  func.func @_lstm_classifier_kernel(%arg0: i32, %arg1: memref<8x8x128xbf16, #tpu.memory_space<vmem>>, %arg2: memref<128x128xbf16, #tpu.memory_space<vmem>>, %arg3: memref<32x128xbf16, #tpu.memory_space<vmem>>, %arg4: memref<1x128xf32, #tpu.memory_space<vmem>>, %arg5: memref<1x32xf32, #tpu.memory_space<vmem>>, %arg6: memref<1x1xf32, #tpu.memory_space<vmem>>, %arg7: memref<1x8xf32, #tpu.memory_space<vmem>>) attributes {dimension_semantics = [#tpu.dimension_semantics<parallel>], iteration_bounds = array<i64: 1>, scalar_prefetch = 0 : i64, scratch_operands = 0 : i64, tpu.core_type = #tpu.core_type<tc>, window_params = [{transform_indices = @transform_0, window_bounds = array<i64: 8, 8, 128>}, {pipeline_mode = #tpu.pipeline_mode<synchronous>, transform_indices = @transform_1, window_bounds = array<i64: 128, 128>}, {pipeline_mode = #tpu.pipeline_mode<synchronous>, transform_indices = @transform_2, window_bounds = array<i64: 32, 128>}, {pipeline_mode = #tpu.pipeline_mode<synchronous>, transform_indices = @transform_3, window_bounds = array<i64: 1, 128>}, {pipeline_mode = #tpu.pipeline_mode<synchronous>, transform_indices = @transform_4, window_bounds = array<i64: 1, 32>}, {pipeline_mode = #tpu.pipeline_mode<synchronous>, transform_indices = @transform_5, window_bounds = array<i64: 1, 1>}, {transform_indices = @transform_6, window_bounds = array<i64: 1, 8>}]} {
    %c0 = arith.constant 0 : index
    %c0_0 = arith.constant 0 : index
    %c0_1 = arith.constant 0 : index
    %0 = vector.load %arg1[%c0, %c0_0, %c0_1] : memref<8x8x128xbf16, #tpu.memory_space<vmem>>, vector<8x8x128xbf16>
    %1 = vector.shape_cast %0 : vector<8x8x128xbf16> to vector<64x128xbf16>
    %c0_2 = arith.constant 0 : index
    %c0_3 = arith.constant 0 : index
    %2 = vector.load %arg2[%c0_2, %c0_3] : memref<128x128xbf16, #tpu.memory_space<vmem>>, vector<128x128xbf16>
    %cst = arith.constant dense<0.000000e+00> : vector<64x128xf32>
    %3 = tpu.matmul %1, %2, %cst {dimension_numbers = #tpu.dot_dimension_numbers<[1], [0], [0], [1], [0, 0, 1, 1], [], []>} : vector<64x128xbf16>, vector<128x128xbf16>, vector<64x128xf32> -> vector<64x128xf32>
    %c0_4 = arith.constant 0 : index
    %c0_5 = arith.constant 0 : index
    %4 = vector.load %arg4[%c0_4, %c0_5] : memref<1x128xf32, #tpu.memory_space<vmem>>, vector<1x128xf32>
    %5 = vector.broadcast %4 : vector<1x128xf32> to vector<64x128xf32>
    %6 = arith.addf %3, %5 : vector<64x128xf32>
    %7 = vector.shape_cast %6 : vector<64x128xf32> to vector<8x8x128xf32>
    %c0_6 = arith.constant 0 : index
    %c0_7 = arith.constant 0 : index
    %8 = vector.load %arg3[%c0_6, %c0_7] : memref<32x128xbf16, #tpu.memory_space<vmem>>, vector<32x128xbf16>
    %cst_8 = arith.constant 0.000000e+00 : f32
    %9 = vector.broadcast %cst_8 : f32 to vector<8x32xf32>
    %cst_9 = arith.constant 0.000000e+00 : f32
    %10 = vector.broadcast %cst_9 : f32 to vector<8x32xf32>
    %11 = vector.extract_strided_slice %7 {offsets = [0, 0, 0], sizes = [8, 1, 128], strides = [1, 1, 1]} : vector<8x8x128xf32> to vector<8x1x128xf32>
    %12 = vector.shape_cast %11 : vector<8x1x128xf32> to vector<8x128xf32>
    %13 = arith.truncf %9 : vector<8x32xf32> to vector<8x32xbf16>
    %cst_10 = arith.constant dense<0.000000e+00> : vector<8x128xf32>
    %14 = tpu.matmul %13, %8, %cst_10 {dimension_numbers = #tpu.dot_dimension_numbers<[1], [0], [0], [1], [0, 0, 1, 1], [], []>} : vector<8x32xbf16>, vector<32x128xbf16>, vector<8x128xf32> -> vector<8x128xf32>
    %15 = arith.addf %12, %14 : vector<8x128xf32>
    %16 = vector.extract_strided_slice %15 {offsets = [0, 64], sizes = [8, 32], strides = [1, 1]} : vector<8x128xf32> to vector<8x32xf32>
    %17 = arith.negf %15 : vector<8x128xf32>
    %18 = math.exp %17 : vector<8x128xf32>
    %cst_11 = arith.constant 1.000000e+00 : f32
    %19 = vector.broadcast %cst_11 : f32 to vector<8x128xf32>
    %20 = arith.addf %19, %18 : vector<8x128xf32>
    %21 = arith.divf %19, %20 : vector<8x128xf32>
    %22 = vector.extract_strided_slice %21 {offsets = [0, 0], sizes = [8, 32], strides = [1, 1]} : vector<8x128xf32> to vector<8x32xf32>
    %23 = vector.extract_strided_slice %21 {offsets = [0, 32], sizes = [8, 32], strides = [1, 1]} : vector<8x128xf32> to vector<8x32xf32>
    %24 = vector.extract_strided_slice %21 {offsets = [0, 96], sizes = [8, 32], strides = [1, 1]} : vector<8x128xf32> to vector<8x32xf32>
    %25 = math.tanh %16 : vector<8x32xf32>
    %26 = arith.mulf %23, %10 : vector<8x32xf32>
    %27 = arith.mulf %22, %25 : vector<8x32xf32>
    %28 = arith.addf %26, %27 : vector<8x32xf32>
    %29 = math.tanh %28 : vector<8x32xf32>
    %30 = arith.mulf %24, %29 : vector<8x32xf32>
    %31 = vector.extract_strided_slice %7 {offsets = [0, 1, 0], sizes = [8, 1, 128], strides = [1, 1, 1]} : vector<8x8x128xf32> to vector<8x1x128xf32>
    %32 = vector.shape_cast %31 : vector<8x1x128xf32> to vector<8x128xf32>
    %33 = arith.truncf %30 : vector<8x32xf32> to vector<8x32xbf16>
    %cst_12 = arith.constant dense<0.000000e+00> : vector<8x128xf32>
    %34 = tpu.matmul %33, %8, %cst_12 {dimension_numbers = #tpu.dot_dimension_numbers<[1], [0], [0], [1], [0, 0, 1, 1], [], []>} : vector<8x32xbf16>, vector<32x128xbf16>, vector<8x128xf32> -> vector<8x128xf32>
    %35 = arith.addf %32, %34 : vector<8x128xf32>
    %36 = vector.extract_strided_slice %35 {offsets = [0, 64], sizes = [8, 32], strides = [1, 1]} : vector<8x128xf32> to vector<8x32xf32>
    %37 = arith.negf %35 : vector<8x128xf32>
    %38 = math.exp %37 : vector<8x128xf32>
    %cst_13 = arith.constant 1.000000e+00 : f32
    %39 = vector.broadcast %cst_13 : f32 to vector<8x128xf32>
    %40 = arith.addf %39, %38 : vector<8x128xf32>
    %41 = arith.divf %39, %40 : vector<8x128xf32>
    %42 = vector.extract_strided_slice %41 {offsets = [0, 0], sizes = [8, 32], strides = [1, 1]} : vector<8x128xf32> to vector<8x32xf32>
    %43 = vector.extract_strided_slice %41 {offsets = [0, 32], sizes = [8, 32], strides = [1, 1]} : vector<8x128xf32> to vector<8x32xf32>
    %44 = vector.extract_strided_slice %41 {offsets = [0, 96], sizes = [8, 32], strides = [1, 1]} : vector<8x128xf32> to vector<8x32xf32>
    %45 = math.tanh %36 : vector<8x32xf32>
    %46 = arith.mulf %43, %28 : vector<8x32xf32>
    %47 = arith.mulf %42, %45 : vector<8x32xf32>
    %48 = arith.addf %46, %47 : vector<8x32xf32>
    %49 = math.tanh %48 : vector<8x32xf32>
    %50 = arith.mulf %44, %49 : vector<8x32xf32>
    %51 = vector.extract_strided_slice %7 {offsets = [0, 2, 0], sizes = [8, 1, 128], strides = [1, 1, 1]} : vector<8x8x128xf32> to vector<8x1x128xf32>
    %52 = vector.shape_cast %51 : vector<8x1x128xf32> to vector<8x128xf32>
    %53 = arith.truncf %50 : vector<8x32xf32> to vector<8x32xbf16>
    %cst_14 = arith.constant dense<0.000000e+00> : vector<8x128xf32>
    %54 = tpu.matmul %53, %8, %cst_14 {dimension_numbers = #tpu.dot_dimension_numbers<[1], [0], [0], [1], [0, 0, 1, 1], [], []>} : vector<8x32xbf16>, vector<32x128xbf16>, vector<8x128xf32> -> vector<8x128xf32>
    %55 = arith.addf %52, %54 : vector<8x128xf32>
    %56 = vector.extract_strided_slice %55 {offsets = [0, 64], sizes = [8, 32], strides = [1, 1]} : vector<8x128xf32> to vector<8x32xf32>
    %57 = arith.negf %55 : vector<8x128xf32>
    %58 = math.exp %57 : vector<8x128xf32>
    %cst_15 = arith.constant 1.000000e+00 : f32
    %59 = vector.broadcast %cst_15 : f32 to vector<8x128xf32>
    %60 = arith.addf %59, %58 : vector<8x128xf32>
    %61 = arith.divf %59, %60 : vector<8x128xf32>
    %62 = vector.extract_strided_slice %61 {offsets = [0, 0], sizes = [8, 32], strides = [1, 1]} : vector<8x128xf32> to vector<8x32xf32>
    %63 = vector.extract_strided_slice %61 {offsets = [0, 32], sizes = [8, 32], strides = [1, 1]} : vector<8x128xf32> to vector<8x32xf32>
    %64 = vector.extract_strided_slice %61 {offsets = [0, 96], sizes = [8, 32], strides = [1, 1]} : vector<8x128xf32> to vector<8x32xf32>
    %65 = math.tanh %56 : vector<8x32xf32>
    %66 = arith.mulf %63, %48 : vector<8x32xf32>
    %67 = arith.mulf %62, %65 : vector<8x32xf32>
    %68 = arith.addf %66, %67 : vector<8x32xf32>
    %69 = math.tanh %68 : vector<8x32xf32>
    %70 = arith.mulf %64, %69 : vector<8x32xf32>
    %71 = vector.extract_strided_slice %7 {offsets = [0, 3, 0], sizes = [8, 1, 128], strides = [1, 1, 1]} : vector<8x8x128xf32> to vector<8x1x128xf32>
    %72 = vector.shape_cast %71 : vector<8x1x128xf32> to vector<8x128xf32>
    %73 = arith.truncf %70 : vector<8x32xf32> to vector<8x32xbf16>
    %cst_16 = arith.constant dense<0.000000e+00> : vector<8x128xf32>
    %74 = tpu.matmul %73, %8, %cst_16 {dimension_numbers = #tpu.dot_dimension_numbers<[1], [0], [0], [1], [0, 0, 1, 1], [], []>} : vector<8x32xbf16>, vector<32x128xbf16>, vector<8x128xf32> -> vector<8x128xf32>
    %75 = arith.addf %72, %74 : vector<8x128xf32>
    %76 = vector.extract_strided_slice %75 {offsets = [0, 64], sizes = [8, 32], strides = [1, 1]} : vector<8x128xf32> to vector<8x32xf32>
    %77 = arith.negf %75 : vector<8x128xf32>
    %78 = math.exp %77 : vector<8x128xf32>
    %cst_17 = arith.constant 1.000000e+00 : f32
    %79 = vector.broadcast %cst_17 : f32 to vector<8x128xf32>
    %80 = arith.addf %79, %78 : vector<8x128xf32>
    %81 = arith.divf %79, %80 : vector<8x128xf32>
    %82 = vector.extract_strided_slice %81 {offsets = [0, 0], sizes = [8, 32], strides = [1, 1]} : vector<8x128xf32> to vector<8x32xf32>
    %83 = vector.extract_strided_slice %81 {offsets = [0, 32], sizes = [8, 32], strides = [1, 1]} : vector<8x128xf32> to vector<8x32xf32>
    %84 = vector.extract_strided_slice %81 {offsets = [0, 96], sizes = [8, 32], strides = [1, 1]} : vector<8x128xf32> to vector<8x32xf32>
    %85 = math.tanh %76 : vector<8x32xf32>
    %86 = arith.mulf %83, %68 : vector<8x32xf32>
    %87 = arith.mulf %82, %85 : vector<8x32xf32>
    %88 = arith.addf %86, %87 : vector<8x32xf32>
    %89 = math.tanh %88 : vector<8x32xf32>
    %90 = arith.mulf %84, %89 : vector<8x32xf32>
    %91 = vector.extract_strided_slice %7 {offsets = [0, 4, 0], sizes = [8, 1, 128], strides = [1, 1, 1]} : vector<8x8x128xf32> to vector<8x1x128xf32>
    %92 = vector.shape_cast %91 : vector<8x1x128xf32> to vector<8x128xf32>
    %93 = arith.truncf %90 : vector<8x32xf32> to vector<8x32xbf16>
    %cst_18 = arith.constant dense<0.000000e+00> : vector<8x128xf32>
    %94 = tpu.matmul %93, %8, %cst_18 {dimension_numbers = #tpu.dot_dimension_numbers<[1], [0], [0], [1], [0, 0, 1, 1], [], []>} : vector<8x32xbf16>, vector<32x128xbf16>, vector<8x128xf32> -> vector<8x128xf32>
    %95 = arith.addf %92, %94 : vector<8x128xf32>
    %96 = vector.extract_strided_slice %95 {offsets = [0, 64], sizes = [8, 32], strides = [1, 1]} : vector<8x128xf32> to vector<8x32xf32>
    %97 = arith.negf %95 : vector<8x128xf32>
    %98 = math.exp %97 : vector<8x128xf32>
    %cst_19 = arith.constant 1.000000e+00 : f32
    %99 = vector.broadcast %cst_19 : f32 to vector<8x128xf32>
    %100 = arith.addf %99, %98 : vector<8x128xf32>
    %101 = arith.divf %99, %100 : vector<8x128xf32>
    %102 = vector.extract_strided_slice %101 {offsets = [0, 0], sizes = [8, 32], strides = [1, 1]} : vector<8x128xf32> to vector<8x32xf32>
    %103 = vector.extract_strided_slice %101 {offsets = [0, 32], sizes = [8, 32], strides = [1, 1]} : vector<8x128xf32> to vector<8x32xf32>
    %104 = vector.extract_strided_slice %101 {offsets = [0, 96], sizes = [8, 32], strides = [1, 1]} : vector<8x128xf32> to vector<8x32xf32>
    %105 = math.tanh %96 : vector<8x32xf32>
    %106 = arith.mulf %103, %88 : vector<8x32xf32>
    %107 = arith.mulf %102, %105 : vector<8x32xf32>
    %108 = arith.addf %106, %107 : vector<8x32xf32>
    %109 = math.tanh %108 : vector<8x32xf32>
    %110 = arith.mulf %104, %109 : vector<8x32xf32>
    %111 = vector.extract_strided_slice %7 {offsets = [0, 5, 0], sizes = [8, 1, 128], strides = [1, 1, 1]} : vector<8x8x128xf32> to vector<8x1x128xf32>
    %112 = vector.shape_cast %111 : vector<8x1x128xf32> to vector<8x128xf32>
    %113 = arith.truncf %110 : vector<8x32xf32> to vector<8x32xbf16>
    %cst_20 = arith.constant dense<0.000000e+00> : vector<8x128xf32>
    %114 = tpu.matmul %113, %8, %cst_20 {dimension_numbers = #tpu.dot_dimension_numbers<[1], [0], [0], [1], [0, 0, 1, 1], [], []>} : vector<8x32xbf16>, vector<32x128xbf16>, vector<8x128xf32> -> vector<8x128xf32>
    %115 = arith.addf %112, %114 : vector<8x128xf32>
    %116 = vector.extract_strided_slice %115 {offsets = [0, 64], sizes = [8, 32], strides = [1, 1]} : vector<8x128xf32> to vector<8x32xf32>
    %117 = arith.negf %115 : vector<8x128xf32>
    %118 = math.exp %117 : vector<8x128xf32>
    %cst_21 = arith.constant 1.000000e+00 : f32
    %119 = vector.broadcast %cst_21 : f32 to vector<8x128xf32>
    %120 = arith.addf %119, %118 : vector<8x128xf32>
    %121 = arith.divf %119, %120 : vector<8x128xf32>
    %122 = vector.extract_strided_slice %121 {offsets = [0, 0], sizes = [8, 32], strides = [1, 1]} : vector<8x128xf32> to vector<8x32xf32>
    %123 = vector.extract_strided_slice %121 {offsets = [0, 32], sizes = [8, 32], strides = [1, 1]} : vector<8x128xf32> to vector<8x32xf32>
    %124 = vector.extract_strided_slice %121 {offsets = [0, 96], sizes = [8, 32], strides = [1, 1]} : vector<8x128xf32> to vector<8x32xf32>
    %125 = math.tanh %116 : vector<8x32xf32>
    %126 = arith.mulf %123, %108 : vector<8x32xf32>
    %127 = arith.mulf %122, %125 : vector<8x32xf32>
    %128 = arith.addf %126, %127 : vector<8x32xf32>
    %129 = math.tanh %128 : vector<8x32xf32>
    %130 = arith.mulf %124, %129 : vector<8x32xf32>
    %131 = vector.extract_strided_slice %7 {offsets = [0, 6, 0], sizes = [8, 1, 128], strides = [1, 1, 1]} : vector<8x8x128xf32> to vector<8x1x128xf32>
    %132 = vector.shape_cast %131 : vector<8x1x128xf32> to vector<8x128xf32>
    %133 = arith.truncf %130 : vector<8x32xf32> to vector<8x32xbf16>
    %cst_22 = arith.constant dense<0.000000e+00> : vector<8x128xf32>
    %134 = tpu.matmul %133, %8, %cst_22 {dimension_numbers = #tpu.dot_dimension_numbers<[1], [0], [0], [1], [0, 0, 1, 1], [], []>} : vector<8x32xbf16>, vector<32x128xbf16>, vector<8x128xf32> -> vector<8x128xf32>
    %135 = arith.addf %132, %134 : vector<8x128xf32>
    %136 = vector.extract_strided_slice %135 {offsets = [0, 64], sizes = [8, 32], strides = [1, 1]} : vector<8x128xf32> to vector<8x32xf32>
    %137 = arith.negf %135 : vector<8x128xf32>
    %138 = math.exp %137 : vector<8x128xf32>
    %cst_23 = arith.constant 1.000000e+00 : f32
    %139 = vector.broadcast %cst_23 : f32 to vector<8x128xf32>
    %140 = arith.addf %139, %138 : vector<8x128xf32>
    %141 = arith.divf %139, %140 : vector<8x128xf32>
    %142 = vector.extract_strided_slice %141 {offsets = [0, 0], sizes = [8, 32], strides = [1, 1]} : vector<8x128xf32> to vector<8x32xf32>
    %143 = vector.extract_strided_slice %141 {offsets = [0, 32], sizes = [8, 32], strides = [1, 1]} : vector<8x128xf32> to vector<8x32xf32>
    %144 = vector.extract_strided_slice %141 {offsets = [0, 96], sizes = [8, 32], strides = [1, 1]} : vector<8x128xf32> to vector<8x32xf32>
    %145 = math.tanh %136 : vector<8x32xf32>
    %146 = arith.mulf %143, %128 : vector<8x32xf32>
    %147 = arith.mulf %142, %145 : vector<8x32xf32>
    %148 = arith.addf %146, %147 : vector<8x32xf32>
    %149 = math.tanh %148 : vector<8x32xf32>
    %150 = arith.mulf %144, %149 : vector<8x32xf32>
    %151 = vector.extract_strided_slice %7 {offsets = [0, 7, 0], sizes = [8, 1, 128], strides = [1, 1, 1]} : vector<8x8x128xf32> to vector<8x1x128xf32>
    %152 = vector.shape_cast %151 : vector<8x1x128xf32> to vector<8x128xf32>
    %153 = arith.truncf %150 : vector<8x32xf32> to vector<8x32xbf16>
    %cst_24 = arith.constant dense<0.000000e+00> : vector<8x128xf32>
    %154 = tpu.matmul %153, %8, %cst_24 {dimension_numbers = #tpu.dot_dimension_numbers<[1], [0], [0], [1], [0, 0, 1, 1], [], []>} : vector<8x32xbf16>, vector<32x128xbf16>, vector<8x128xf32> -> vector<8x128xf32>
    %155 = arith.addf %152, %154 : vector<8x128xf32>
    %156 = vector.extract_strided_slice %155 {offsets = [0, 64], sizes = [8, 32], strides = [1, 1]} : vector<8x128xf32> to vector<8x32xf32>
    %157 = arith.negf %155 : vector<8x128xf32>
    %158 = math.exp %157 : vector<8x128xf32>
    %cst_25 = arith.constant 1.000000e+00 : f32
    %159 = vector.broadcast %cst_25 : f32 to vector<8x128xf32>
    %160 = arith.addf %159, %158 : vector<8x128xf32>
    %161 = arith.divf %159, %160 : vector<8x128xf32>
    %162 = vector.extract_strided_slice %161 {offsets = [0, 0], sizes = [8, 32], strides = [1, 1]} : vector<8x128xf32> to vector<8x32xf32>
    %163 = vector.extract_strided_slice %161 {offsets = [0, 32], sizes = [8, 32], strides = [1, 1]} : vector<8x128xf32> to vector<8x32xf32>
    %164 = vector.extract_strided_slice %161 {offsets = [0, 96], sizes = [8, 32], strides = [1, 1]} : vector<8x128xf32> to vector<8x32xf32>
    %165 = math.tanh %156 : vector<8x32xf32>
    %166 = arith.mulf %163, %148 : vector<8x32xf32>
    %167 = arith.mulf %162, %165 : vector<8x32xf32>
    %168 = arith.addf %166, %167 : vector<8x32xf32>
    %169 = math.tanh %168 : vector<8x32xf32>
    %170 = arith.mulf %164, %169 : vector<8x32xf32>
    %c0_26 = arith.constant 0 : index
    %c0_27 = arith.constant 0 : index
    %171 = vector.load %arg5[%c0_26, %c0_27] : memref<1x32xf32, #tpu.memory_space<vmem>>, vector<1x32xf32>
    %cst_28 = arith.constant dense<0.000000e+00> : vector<1x8xf32>
    %172 = tpu.matmul %171, %170, %cst_28 {dimension_numbers = #tpu.dot_dimension_numbers<[1], [1], [0], [0], [0, 0, 1, 0], [], []>} : vector<1x32xf32>, vector<8x32xf32>, vector<1x8xf32> -> vector<1x8xf32>
    %c0_29 = arith.constant 0 : index
    %c0_30 = arith.constant 0 : index
    %173 = vector.load %arg6[%c0_29, %c0_30] : memref<1x1xf32, #tpu.memory_space<vmem>>, vector<1x1xf32>
    %174 = vector.broadcast %173 : vector<1x1xf32> to vector<1x8xf32>
    %175 = arith.addf %172, %174 : vector<1x8xf32>
    %176 = arith.negf %175 : vector<1x8xf32>
    %177 = math.exp %176 : vector<1x8xf32>
    %cst_31 = arith.constant 1.000000e+00 : f32
    %178 = vector.broadcast %cst_31 : f32 to vector<1x8xf32>
    %179 = arith.addf %178, %177 : vector<1x8xf32>
    %180 = arith.divf %178, %179 : vector<1x8xf32>
    %c0_32 = arith.constant 0 : index
    %c0_33 = arith.constant 0 : index
    %181 = vector.load %arg7[%c0_32, %c0_33] : memref<1x8xf32, #tpu.memory_space<vmem>>, vector<1x8xf32>
    tpu.vector_store %arg7[%c0_32, %c0_33], %180 {strides = array<i32>} : memref<1x8xf32, #tpu.memory_space<vmem>>, vector<1x8xf32>,
    return
  }
  func.func @transform_0(%arg0: i32) -> (i32, i32, i32) {
    %c0_i32 = arith.constant 0 : i32
    %c0_i32_0 = arith.constant 0 : i32
    %c0_i32_1 = arith.constant 0 : i32
    return %arg0, %c0_i32, %c0_i32_0 : i32, i32, i32
  }
  func.func @transform_1(%arg0: i32) -> (i32, i32) {
    %c0_i32 = arith.constant 0 : i32
    %c0_i32_0 = arith.constant 0 : i32
    %c0_i32_1 = arith.constant 0 : i32
    return %c0_i32, %c0_i32_0 : i32, i32
  }
  func.func @transform_2(%arg0: i32) -> (i32, i32) {
    %c0_i32 = arith.constant 0 : i32
    %c0_i32_0 = arith.constant 0 : i32
    %c0_i32_1 = arith.constant 0 : i32
    return %c0_i32, %c0_i32_0 : i32, i32
  }
  func.func @transform_3(%arg0: i32) -> (i32, i32) {
    %c0_i32 = arith.constant 0 : i32
    %c0_i32_0 = arith.constant 0 : i32
    %c0_i32_1 = arith.constant 0 : i32
    return %c0_i32, %c0_i32_0 : i32, i32
  }
  func.func @transform_4(%arg0: i32) -> (i32, i32) {
    %c0_i32 = arith.constant 0 : i32
    %c0_i32_0 = arith.constant 0 : i32
    %c0_i32_1 = arith.constant 0 : i32
    return %c0_i32, %c0_i32_0 : i32, i32
  }
  func.func @transform_5(%arg0: i32) -> (i32, i32) {
    %c0_i32 = arith.constant 0 : i32
    %c0_i32_0 = arith.constant 0 : i32
    %c0_i32_1 = arith.constant 0 : i32
    return %c0_i32, %c0_i32_0 : i32, i32
  }
  func.func @transform_6(%arg0: i32) -> (i32, i32) {
    %c0_i32 = arith.constant 0 : i32
    %c0_i32_0 = arith.constant 0 : i32
    return %c0_i32, %arg0 : i32, i32
  }
}

</mosaic_0001>

<llo_original>
// kernel: tpu_custom_call.1
$region0: #{tpu_custom_call.1}
  #allocation0 [shape = 'u32[]', space=smem, size = 0x4, offset = 0x4, fixed_abs, tag = 'smem constant byte address 0x4 - core index']
  #allocation1 [shape = 'u32[144,128]{1,0:T(1,128)}', space=vmem, size = 0x12000, scoped, tag = 'internal scratch']
  #allocation2 [shape = 'f32[1,1]{1,0:T(1,128)S(1)}', space=vmem, size = 0x200, scoped, tag = 'scoped memory for tpu_custom_call.1']
  %s0 = inlined_call_operand.hbm [shape: bf16[8,8,128], index: 0, kind: input, shape index: {}]
  %s1 = inlined_call_operand.hbm [shape: bf16[128,128], index: 1, kind: input, shape index: {}]
  %s2 = inlined_call_operand.hbm [shape: bf16[32,128], index: 2, kind: input, shape index: {}]
  %s3 = inlined_call_operand.vmem [shape: f32[1,128], index: 3, kind: input, shape index: {}]
  %s4 = inlined_call_operand.vmem [shape: f32[1,32], index: 4, kind: input, shape index: {}]
  %s5 = inlined_call_operand.<no memory space> [shape: f32[1,1], index: 5, kind: input, shape index: {}]
  %s6 = inlined_call_operand.hbm [shape: f32[1,8], index: 6, kind: output, shape index: {}]
  %s7 = sld [smem:[#allocation0]]
  $region46: #{tpu_custom_call.1} parent=0
    _
  %s9 = ssub.s32 1, %s7
  %s10 = scalar_select 0, %s9, %s7
  %v11 = vstv %s5
  %12 = vst [vmem:[#allocation2] sm:$0x1] %v11
  $region1: #{tpu_custom_call.1} parent=0
    #allocation3 [shape = 'u8[16384]{0}', space=vmem, size = 0x4000, scoped, tag = 'input window, operand 0, single buffered']
    #allocation4 [shape = 's32[1]{0}', space=sflag, size = 0x4, scoped, tag = 'scoped memory for tpu_custom_call.1']
    #allocation5 [shape = 's32[1]{0}', space=sflag, size = 0x4, scoped, tag = 'scoped memory for tpu_custom_call.1']
    #allocation6 [shape = 'u8[32768]{0}', space=vmem, size = 0x8000, scoped, tag = 'input window, operand 1, single buffered']
    #allocation7 [shape = 's32[1]{0}', space=sflag, size = 0x4, scoped, tag = 'scoped memory for tpu_custom_call.1']
    #allocation8 [shape = 'u8[8192]{0}', space=vmem, size = 0x2000, scoped, tag = 'input window, operand 2, single buffered']
    #allocation9 [shape = 'u8[512]{0}', space=vmem, size = 0x400, scoped, tag = 'output window, operand 0, single buffered']
    %13 = vsyncpa [#allocation4], 0
    %14 = vsyncpa [#allocation7], 0
    %15 = vsyncpa [#allocation5], 0
    // Predicated region
    $region2: #{tpu_custom_call.1} parent=1 // pred_check
      _
    $region3: #{tpu_custom_call.1} parent=1 // pred_check_branch
      %17 = sbr.rel (0) target = $region5
    $region4: #{tpu_custom_call.1} parent=1 // pred_region
      %s19 = ssub.s32 512, 512
      %20 = vsyncadd [#allocation4], %s19
      %s21 = sshll.u32 [#allocation3], 4
      %s22 = int_to_ptr.vmem [resolvable:$true] %s21
      %27 = dma.hbm_to_vmem [thread:$0]  %s0, 512, %s22, [#allocation4], 64, 64, 4
    $region5: #{tpu_custom_call.1} parent=1 // pred_fallthru
      _
    // Predicated region
    $region6: #{tpu_custom_call.1} parent=1 // pred_check
      _
    $region7: #{tpu_custom_call.1} parent=1 // pred_check_branch
      %29 = sbr.rel (0) target = $region9
    $region8: #{tpu_custom_call.1} parent=1 // pred_region
      %s31 = ssub.s32 1024, 1024
      %32 = vsyncadd [#allocation7], %s31
      %s33 = sshll.u32 [#allocation6], 4
      %s34 = int_to_ptr.vmem [resolvable:$true] %s33
      %39 = dma.hbm_to_vmem [thread:$0]  %s1, 1024, %s34, [#allocation7], 64, 64, 4
    $region9: #{tpu_custom_call.1} parent=1 // pred_fallthru
      _
    // Predicated region
    $region10: #{tpu_custom_call.1} parent=1 // pred_check
      _
    $region11: #{tpu_custom_call.1} parent=1 // pred_check_branch
      %41 = sbr.rel (0) target = $region13
    $region12: #{tpu_custom_call.1} parent=1 // pred_region
      %s43 = ssub.s32 256, 256
      %44 = vsyncadd [#allocation7], %s43
      %s45 = sshll.u32 [#allocation8], 4
      %s46 = int_to_ptr.vmem [resolvable:$true] %s45
      %51 = dma.hbm_to_vmem [thread:$0]  %s2, 256, %s46, [#allocation7], 64, 64, 4
    $region13: #{tpu_custom_call.1} parent=1 // pred_fallthru
      _
    // Predicated region
    $region14: #{tpu_custom_call.1} parent=1 // pred_check
      _
    $region15: #{tpu_custom_call.1} parent=1 // pred_check_branch
      %53 = sbr.rel (0) target = $region17
    $region16: #{tpu_custom_call.1} parent=1 // pred_region
      _
    $region17: #{tpu_custom_call.1} parent=1 // pred_fallthru
      _
    // Predicated region
    $region18: #{tpu_custom_call.1} parent=1 // pred_check
      _
    $region19: #{tpu_custom_call.1} parent=1 // pred_check_branch
      %55 = sbr.rel (0) target = $region21
    $region20: #{tpu_custom_call.1} parent=1 // pred_region
      _
    $region21: #{tpu_custom_call.1} parent=1 // pred_fallthru
      _
    // Predicated region
    $region22: #{tpu_custom_call.1} parent=1 // pred_check
      _
    $region23: #{tpu_custom_call.1} parent=1 // pred_check_branch
      %57 = sbr.rel (0) target = $region25
    $region24: #{tpu_custom_call.1} parent=1 // pred_region
      _
    $region25: #{tpu_custom_call.1} parent=1 // pred_fallthru
      _
    // Predicated region
    $region26: #{tpu_custom_call.1} parent=1 // pred_check
      _
    $region27: #{tpu_custom_call.1} parent=1 // pred_check_branch
      %59 = sbr.rel (0) target = $region29
    $region28: #{tpu_custom_call.1} parent=1 // pred_region
      %60 = dma.done [#allocation4], 512
    $region29: #{tpu_custom_call.1} parent=1 // pred_fallthru
      _
    // Predicated region
    $region30: #{tpu_custom_call.1} parent=1 // pred_check
      _
    $region31: #{tpu_custom_call.1} parent=1 // pred_check_branch
      %62 = sbr.rel (0) target = $region33
    $region32: #{tpu_custom_call.1} parent=1 // pred_region
      %63 = dma.done [#allocation7], 1024
    $region33: #{tpu_custom_call.1} parent=1 // pred_fallthru
      _
    // Predicated region
    $region34: #{tpu_custom_call.1} parent=1 // pred_check
      _
    $region35: #{tpu_custom_call.1} parent=1 // pred_check_branch
      %65 = sbr.rel (0) target = $region37
    $region36: #{tpu_custom_call.1} parent=1 // pred_region
      %66 = dma.done [#allocation7], 256
    $region37: #{tpu_custom_call.1} parent=1 // pred_fallthru
      _
    %v68 = vld [vmem:[#allocation3] sm:$0xf]
    %v69 = vld [vmem:[#allocation3 + $0x4] sm:$0xf]
    %v70 = vld [vmem:[#allocation3 + $0x8] sm:$0xf]
    %v71 = vld [vmem:[#allocation3 + $0xc] sm:$0xf]
    %v72 = vld [vmem:[#allocation3 + $0x10] sm:$0xf]
    %v73 = vld [vmem:[#allocation3 + $0x14] sm:$0xf]
    %v74 = vld [vmem:[#allocation3 + $0x18] sm:$0xf]
    %v75 = vld [vmem:[#allocation3 + $0x1c] sm:$0xf]
    %v76 = vld [vmem:[#allocation6] sm:$0xf]
    %v77 = vld [vmem:[#allocation6 + $0x4] sm:$0xf]
    %v78 = vld [vmem:[#allocation6 + $0x8] sm:$0xf]
    %v79 = vld [vmem:[#allocation6 + $0xc] sm:$0xf]
    %v80 = vld [vmem:[#allocation6 + $0x10] sm:$0xf]
    %v81 = vld [vmem:[#allocation6 + $0x14] sm:$0xf]
    %v82 = vld [vmem:[#allocation6 + $0x18] sm:$0xf]
    %v83 = vld [vmem:[#allocation6 + $0x1c] sm:$0xf]
    %v84 = vld [vmem:[#allocation6 + $0x20] sm:$0xf]
    %v85 = vld [vmem:[#allocation6 + $0x24] sm:$0xf]
    %v86 = vld [vmem:[#allocation6 + $0x28] sm:$0xf]
    %v87 = vld [vmem:[#allocation6 + $0x2c] sm:$0xf]
    %v88 = vld [vmem:[#allocation6 + $0x30] sm:$0xf]
    %v89 = vld [vmem:[#allocation6 + $0x34] sm:$0xf]
    %v90 = vld [vmem:[#allocation6 + $0x38] sm:$0xf]
    %v91 = vld [vmem:[#allocation6 + $0x3c] sm:$0xf]
    %v92 = vld [vmem:[%s3] sm:$0x1]
    %v94 = vlaneseq
    %v95 = vshrl.u32 %v94, 7
    %v96 = vsub.s32 0, %v95
    %v97 = vrot.slane %v92, %v96
    %v107 = vunpack.c.l.b16 %v68
    %v108 = vunpack.c.l.b16 %v69
    %v109 = vunpack.c.l.b16 %v70
    %v110 = vunpack.c.l.b16 %v71
    %v111 = vunpack.c.l.b16 %v72
    %v112 = vunpack.c.l.b16 %v73
    %v113 = vunpack.c.l.b16 %v74
    %v114 = vunpack.c.l.b16 %v75
    %v115 = vpack.c.b16 %v108, %v107
    %v116 = vpack.c.b16 %v110, %v109
    %v117 = vpack.c.b16 %v112, %v111
    %v118 = vpack.c.b16 %v114, %v113
    %v139 = vunpack.c.l.b16 %v76
    %v140 = vunpack.c.l.b16 %v77
    %v141 = vunpack.c.l.b16 %v78
    %v142 = vunpack.c.l.b16 %v79
    %v143 = vunpack.c.l.b16 %v80
    %v144 = vunpack.c.l.b16 %v81
    %v145 = vunpack.c.l.b16 %v82
    %v146 = vunpack.c.l.b16 %v83
    %v147 = vunpack.c.l.b16 %v84
    %v148 = vunpack.c.l.b16 %v85
    %v149 = vunpack.c.l.b16 %v86
    %v150 = vunpack.c.l.b16 %v87
    %v151 = vunpack.c.l.b16 %v88
    %v152 = vunpack.c.l.b16 %v89
    %v153 = vunpack.c.l.b16 %v90
    %v154 = vunpack.c.l.b16 %v91
    %v155 = vpack.c.b16 %v140, %v139
    %v156 = vpack.c.b16 %v142, %v141
    %v157 = vpack.c.b16 %v144, %v143
    %v158 = vpack.c.b16 %v146, %v145
    %v159 = vpack.c.b16 %v148, %v147
    %v160 = vpack.c.b16 %v150, %v149
    %v161 = vpack.c.b16 %v152, %v151
    %v162 = vpack.c.b16 %v154, %v153
    %171 = vmatprep.subr.bf16.mxu0 0
    %172 = vmatpush1.bf16.msra.mxu0 %v155
    %173 = vmatprep.subr.bf16.mxu0 0
    %174 = vmatpush1.bf16.msra.mxu0 %v156
    %175 = vmatprep.subr.bf16.mxu0 0
    %176 = vmatpush1.bf16.msra.mxu0 %v157
    %177 = vmatprep.subr.bf16.mxu0 0
    %178 = vmatpush1.bf16.msra.mxu0 %v158
    %179 = vmatprep.subr.bf16.mxu0 0
    %180 = vmatpush1.bf16.msra.mxu0 %v159
    %181 = vmatprep.subr.bf16.mxu0 0
    %182 = vmatpush1.bf16.msra.mxu0 %v160
    %183 = vmatprep.subr.bf16.mxu0 0
    %184 = vmatpush1.bf16.msra.mxu0 %v161
    %185 = vmatprep.subr.bf16.mxu0 0
    %186 = vmatpush1.bf16.msra.mxu0 %v162
    %187 = vmatprep.subr.bf16.mxu0 0
    %188 = vmatpush1.bf16.msra.mxu0 0
    %189 = vmatprep.subr.bf16.mxu0 0
    %190 = vmatpush1.bf16.msra.mxu0 0
    %191 = vmatprep.subr.bf16.mxu0 0
    %192 = vmatpush1.bf16.msra.mxu0 0
    %193 = vmatprep.subr.bf16.mxu0 0
    %194 = vmatpush1.bf16.msra.mxu0 0
    %195 = vmatprep.subr.bf16.mxu0 0
    %196 = vmatpush1.bf16.msra.mxu0 0
    %197 = vmatprep.subr.bf16.mxu0 0
    %198 = vmatpush1.bf16.msra.mxu0 0
    %199 = vmatprep.subr.bf16.mxu0 0
    %200 = vmatpush1.bf16.msra.mxu0 0
    %201 = vmatprep.subr.bf16.mxu0 0
    %202 = vmatpush1.bf16.msra.mxu0 0
    %203 = vmatprep.mubr.bf16.mxu0 0
    %204 = vmatmul.mubr.bf16.gmra.mrb[0].mxu0 %v115
    %v205 = vpop.f32.mrb[0].mxu0
    %v206 = vadd.f32 %v97, %v205
    %v207 = vpop.f32.mrb[0].mxu0
    %v208 = vpop.f32.mrb[0].mxu0
    %v209 = vadd.f32 %v97, %v208
    %v210 = vpop.f32.mrb[0].mxu0
    %211 = vmatprep.mubr.bf16.mxu0 0
    %212 = vmatmul.mubr.bf16.gmra.mrb[0].mxu0 %v116
    %v213 = vpop.f32.mrb[0].mxu0
    %v214 = vadd.f32 %v97, %v213
    %v215 = vpop.f32.mrb[0].mxu0
    %v216 = vpop.f32.mrb[0].mxu0
    %v217 = vadd.f32 %v97, %v216
    %v218 = vpop.f32.mrb[0].mxu0
    %219 = vmatprep.mubr.bf16.mxu0 0
    %220 = vmatmul.mubr.bf16.gmra.mrb[0].mxu0 %v117
    %v221 = vpop.f32.mrb[0].mxu0
    %v222 = vadd.f32 %v97, %v221
    %v223 = vpop.f32.mrb[0].mxu0
    %v224 = vpop.f32.mrb[0].mxu0
    %v225 = vadd.f32 %v97, %v224
    %v226 = vpop.f32.mrb[0].mxu0
    %227 = vmatprep.mubr.bf16.mxu0 0
    %228 = vmatmul.mubr.bf16.gmra.mrb[0].mxu0 %v118
    %v229 = vpop.f32.mrb[0].mxu0
    %v230 = vadd.f32 %v97, %v229
    %v231 = vpop.f32.mrb[0].mxu0
    %v232 = vpop.f32.mrb[0].mxu0
    %v233 = vadd.f32 %v97, %v232
    %v234 = vpop.f32.mrb[0].mxu0
    %235 = vdwg.mxu0
    %v236 = vld [vmem:[#allocation8] sm:$0xf]
    %v237 = vld [vmem:[#allocation8 + $0x4] sm:$0xf]
    %v238 = vld [vmem:[#allocation8 + $0x8] sm:$0xf]
    %v239 = vld [vmem:[#allocation8 + $0xc] sm:$0xf]
    %v244 = vunpack.c.l.b16 %v236
    %v245 = vunpack.c.l.b16 %v237
    %v246 = vunpack.c.l.b16 %v238
    %v247 = vunpack.c.l.b16 %v239
    %v248 = vpack.c.b16 %v245, %v244
    %v249 = vpack.c.b16 %v247, %v246
    %vm252 = vcmask 261120
    %v254 = vsel %vm252, 0, 0
    %256 = vmatprep.subr.bf16.mxu0 0
    %257 = vmatpush1.bf16.msra.mxu0 %v248
    %258 = vmatprep.subr.bf16.mxu0 0
    %259 = vmatpush1.bf16.msra.mxu0 %v249
    %260 = vmatprep.subr.bf16.mxu0 0
    %261 = vmatpush1.bf16.msra.mxu0 0
    %262 = vmatprep.subr.bf16.mxu0 0
    %263 = vmatpush1.bf16.msra.mxu0 0
    %264 = vmatprep.subr.bf16.mxu0 0
    %265 = vmatpush1.bf16.msra.mxu0 0
    %266 = vmatprep.subr.bf16.mxu0 0
    %267 = vmatpush1.bf16.msra.mxu0 0
    %268 = vmatprep.subr.bf16.mxu0 0
    %269 = vmatpush1.bf16.msra.mxu0 0
    %270 = vmatprep.subr.bf16.mxu0 0
    %271 = vmatpush1.bf16.msra.mxu0 0
    %272 = vmatprep.subr.bf16.mxu0 0
    %273 = vmatpush1.bf16.msra.mxu0 0
    %274 = vmatprep.subr.bf16.mxu0 0
    %275 = vmatpush1.bf16.msra.mxu0 0
    %276 = vmatprep.subr.bf16.mxu0 0
    %277 = vmatpush1.bf16.msra.mxu0 0
    %278 = vmatprep.subr.bf16.mxu0 0
    %279 = vmatpush1.bf16.msra.mxu0 0
    %280 = vmatprep.subr.bf16.mxu0 0
    %281 = vmatpush1.bf16.msra.mxu0 0
    %282 = vmatprep.subr.bf16.mxu0 0
    %283 = vmatpush1.bf16.msra.mxu0 0
    %284 = vmatprep.subr.bf16.mxu0 0
    %285 = vmatpush1.bf16.msra.mxu0 0
    %286 = vmatprep.subr.bf16.mxu0 0
    %287 = vmatpush1.bf16.msra.mxu0 0
    %288 = vmatprep.mubr.bf16.mxu0 0
    %289 = vmatmul.mubr.bf16.gmra.mrb[0].mxu0 %v254
    %v290 = vpop.f32.mrb[0].mxu0
    %v291 = vadd.f32 0.0, %v290
    %v292 = vpop.f32.mrb[0].mxu0
    %v293 = vpop.f32.mrb[0].mxu0
    %v294 = vpop.f32.mrb[0].mxu0
    %295 = vdwg.mxu0
    %v297 = vrot.slane %v291, 1
    %v298 = vrot.slane %v291, 2
    %v299 = vrot.slane %v291, 3
    %v300 = vrot.slane %v291, 4
    %v301 = vrot.slane %v291, 5
    %v302 = vrot.slane %v291, 6
    %v303 = vrot.slane %v291, 7
    %v312 = vadd.f32 %v206, %v291
    %v313 = vadd.f32 %v209, %v297
    %v314 = vadd.f32 %v214, %v298
    %v315 = vadd.f32 %v217, %v299
    %v316 = vadd.f32 %v222, %v300
    %v317 = vadd.f32 %v225, %v301
    %v318 = vadd.f32 %v230, %v302
    %v319 = vadd.f32 %v233, %v303
    %v320 = vxor.u32 %v312, 2147483648
    %v321 = vxor.u32 %v313, 2147483648
    %v322 = vxor.u32 %v314, 2147483648
    %v323 = vxor.u32 %v315, 2147483648
    %v324 = vxor.u32 %v316, 2147483648
    %v325 = vxor.u32 %v317, 2147483648
    %v326 = vxor.u32 %v318, 2147483648
    %v327 = vxor.u32 %v319, 2147483648
    %v328 = vmul.f32 %v320, 1.442695
    %v329 = vpow.pop %v328
    %v330 = vmul.f32 %v321, 1.442695
    %v331 = vpow.pop %v330
    %v332 = vmul.f32 %v322, 1.442695
    %v333 = vpow.pop %v332
    %v334 = vmul.f32 %v323, 1.442695
    %v335 = vpow.pop %v334
    %v336 = vmul.f32 %v324, 1.442695
    %v337 = vpow.pop %v336
    %v338 = vmul.f32 %v325, 1.442695
    %v339 = vpow.pop %v338
    %v340 = vmul.f32 %v326, 1.442695
    %v341 = vpow.pop %v340
    %v342 = vmul.f32 %v327, 1.442695
    %v343 = vpow.pop %v342
    %v344 = vadd.f32 %v329, 1.0
    %v345 = vadd.f32 %v331, 1.0
    %v346 = vadd.f32 %v333, 1.0
    %v347 = vadd.f32 %v335, 1.0
    %v348 = vadd.f32 %v337, 1.0
    %v349 = vadd.f32 %v339, 1.0
    %v350 = vadd.f32 %v341, 1.0
    %v351 = vadd.f32 %v343, 1.0
    %v352 = vrcp.pop %v344
    %v353 = vmul.f32 1.0, %v352
    %v354 = vrcp.pop %v345
    %v355 = vmul.f32 1.0, %v354
    %v356 = vrcp.pop %v346
    %v357 = vmul.f32 1.0, %v356
    %v358 = vrcp.pop %v347
    %v359 = vmul.f32 1.0, %v358
    %v360 = vrcp.pop %v348
    %v361 = vmul.f32 1.0, %v360
    %v362 = vrcp.pop %v349
    %v363 = vmul.f32 1.0, %v362
    %v364 = vrcp.pop %v350
    %v365 = vmul.f32 1.0, %v364
    %v366 = vrcp.pop %v351
    %v367 = vmul.f32 1.0, %v366
    %v368 = vtanh.pop %v312
    %v369 = vtanh.pop %v313
    %v370 = vtanh.pop %v314
    %v371 = vtanh.pop %v315
    %v372 = vtanh.pop %v316
    %v373 = vtanh.pop %v317
    %v374 = vtanh.pop %v318
    %v375 = vtanh.pop %v319
    %v376 = vmul.f32 %v353, 0.0
    %v377 = vmul.f32 %v355, 0.0
    %v378 = vmul.f32 %v357, 0.0
    %v379 = vmul.f32 %v359, 0.0
    %v380 = vmul.f32 %v361, 0.0
    %v381 = vmul.f32 %v363, 0.0
    %v382 = vmul.f32 %v365, 0.0
    %v383 = vmul.f32 %v367, 0.0
    %392 = vrot.lane.b32.xlu0 %v368, 64
    %v393 = vpop.permute.xlu0 %392
    %394 = vrot.lane.b32.xlu0 %v369, 64
    %v395 = vpop.permute.xlu0 %394
    %396 = vrot.lane.b32.xlu0 %v370, 64
    %v397 = vpop.permute.xlu0 %396
    %398 = vrot.lane.b32.xlu0 %v371, 64
    %v399 = vpop.permute.xlu0 %398
    %400 = vrot.lane.b32.xlu0 %v372, 64
    %v401 = vpop.permute.xlu0 %400
    %402 = vrot.lane.b32.xlu0 %v373, 64
    %v403 = vpop.permute.xlu0 %402
    %404 = vrot.lane.b32.xlu0 %v374, 64
    %v405 = vpop.permute.xlu0 %404
    %406 = vrot.lane.b32.xlu0 %v375, 64
    %v407 = vpop.permute.xlu0 %406
    %v416 = vmul.f32 %v353, %v393
    %v417 = vmul.f32 %v355, %v395
    %v418 = vmul.f32 %v357, %v397
    %v419 = vmul.f32 %v359, %v399
    %v420 = vmul.f32 %v361, %v401
    %v421 = vmul.f32 %v363, %v403
    %v422 = vmul.f32 %v365, %v405
    %v423 = vmul.f32 %v367, %v407
    %432 = vrot.lane.b32.xlu0 %v416, 32
    %v433 = vpop.permute.xlu0 %432
    %434 = vrot.lane.b32.xlu0 %v417, 32
    %v435 = vpop.permute.xlu0 %434
    %436 = vrot.lane.b32.xlu0 %v418, 32
    %v437 = vpop.permute.xlu0 %436
    %438 = vrot.lane.b32.xlu0 %v419, 32
    %v439 = vpop.permute.xlu0 %438
    %440 = vrot.lane.b32.xlu0 %v420, 32
    %v441 = vpop.permute.xlu0 %440
    %442 = vrot.lane.b32.xlu0 %v421, 32
    %v443 = vpop.permute.xlu0 %442
    %444 = vrot.lane.b32.xlu0 %v422, 32
    %v445 = vpop.permute.xlu0 %444
    %446 = vrot.lane.b32.xlu0 %v423, 32
    %v447 = vpop.permute.xlu0 %446
    %v456 = vadd.f32 %v376, %v433
    %v457 = vadd.f32 %v377, %v435
    %v458 = vadd.f32 %v378, %v437
    %v459 = vadd.f32 %v379, %v439
    %v460 = vadd.f32 %v380, %v441
    %v461 = vadd.f32 %v381, %v443
    %v462 = vadd.f32 %v382, %v445
    %v463 = vadd.f32 %v383, %v447
    %v464 = vtanh.pop %v456
    %v465 = vtanh.pop %v457
    %v466 = vtanh.pop %v458
    %v467 = vtanh.pop %v459
    %v468 = vtanh.pop %v460
    %v469 = vtanh.pop %v461
    %v470 = vtanh.pop %v462
    %v471 = vtanh.pop %v463
    %480 = vrot.lane.b32.xlu0 %v464, 64
    %v481 = vpop.permute.xlu0 %480
    %482 = vrot.lane.b32.xlu0 %v465, 64
    %v483 = vpop.permute.xlu0 %482
    %484 = vrot.lane.b32.xlu0 %v466, 64
    %v485 = vpop.permute.xlu0 %484
    %486 = vrot.lane.b32.xlu0 %v467, 64
    %v487 = vpop.permute.xlu0 %486
    %488 = vrot.lane.b32.xlu0 %v468, 64
    %v489 = vpop.permute.xlu0 %488
    %490 = vrot.lane.b32.xlu0 %v469, 64
    %v491 = vpop.permute.xlu0 %490
    %492 = vrot.lane.b32.xlu0 %v470, 64
    %v493 = vpop.permute.xlu0 %492
    %494 = vrot.lane.b32.xlu0 %v471, 64
    %v495 = vpop.permute.xlu0 %494
    %v504 = vmul.f32 %v353, %v481
    %v505 = vmul.f32 %v355, %v483
    %v506 = vmul.f32 %v357, %v485
    %v507 = vmul.f32 %v359, %v487
    %v508 = vmul.f32 %v361, %v489
    %v509 = vmul.f32 %v363, %v491
    %v510 = vmul.f32 %v365, %v493
    %v511 = vmul.f32 %v367, %v495
    %v512 = vpack.c.bf16 %v504, %v504
    %v513 = vpack.c.bf16 %v505, %v505
    %v514 = vpack.c.bf16 %v506, %v506
    %v515 = vpack.c.bf16 %v507, %v507
    %v516 = vpack.c.bf16 %v508, %v508
    %v517 = vpack.c.bf16 %v509, %v509
    %v518 = vpack.c.bf16 %v510, %v510
    %v519 = vpack.c.bf16 %v511, %v511
    %v528 = vunpack.c.l.b16 %v512
    %v529 = vunpack.c.l.b16 %v513
    %v530 = vunpack.c.l.b16 %v514
    %v531 = vunpack.c.l.b16 %v515
    %v532 = vunpack.c.l.b16 %v516
    %v533 = vunpack.c.l.b16 %v517
    %v534 = vunpack.c.l.b16 %v518
    %v535 = vunpack.c.l.b16 %v519
    %v536 = vrot.slane %v529, 7
    %vm537 = vcmask 1041409
    %v538 = vsel %vm537, %v536, %v528
    %v539 = vrot.slane %v530, 6
    %vm540 = vcmask 1042434
    %v541 = vsel %vm540, %v539, %v538
    %v542 = vrot.slane %v531, 5
    %vm543 = vcmask 1043459
    %v544 = vsel %vm543, %v542, %v541
    %v545 = vrot.slane %v532, 4
    %vm546 = vcmask 1044484
    %v547 = vsel %vm546, %v545, %v544
    %v548 = vrot.slane %v533, 3
    %vm549 = vcmask 1045509
    %v550 = vsel %vm549, %v548, %v547
    %v551 = vrot.slane %v534, 2
    %vm552 = vcmask 1046534
    %v553 = vsel %vm552, %v551, %v550
    %v554 = vrot.slane %v535, 1
    %vm555 = vcmask 1047559
    %v556 = vsel %vm555, %v554, %v553
    %v557 = vpack.c.b16 %v556, %v556
    %558 = vrot.lane.b32.xlu0 %v557, 32
    %v559 = vpop.permute.xlu0 %558
    %v561 = vsel %vm252, %v559, 0
    %563 = vmatprep.subr.bf16.mxu0 0
    %564 = vmatpush1.bf16.msra.mxu0 %v248
    %565 = vmatprep.subr.bf16.mxu0 0
    %566 = vmatpush1.bf16.msra.mxu0 %v249
    %567 = vmatprep.subr.bf16.mxu0 0
    %568 = vmatpush1.bf16.msra.mxu0 0
    %569 = vmatprep.subr.bf16.mxu0 0
    %570 = vmatpush1.bf16.msra.mxu0 0
    %571 = vmatprep.subr.bf16.mxu0 0
    %572 = vmatpush1.bf16.msra.mxu0 0
    %573 = vmatprep.subr.bf16.mxu0 0
    %574 = vmatpush1.bf16.msra.mxu0 0
    %575 = vmatprep.subr.bf16.mxu0 0
    %576 = vmatpush1.bf16.msra.mxu0 0
    %577 = vmatprep.subr.bf16.mxu0 0
    %578 = vmatpush1.bf16.msra.mxu0 0
    %579 = vmatprep.subr.bf16.mxu0 0
    %580 = vmatpush1.bf16.msra.mxu0 0
    %581 = vmatprep.subr.bf16.mxu0 0
    %582 = vmatpush1.bf16.msra.mxu0 0
    %583 = vmatprep.subr.bf16.mxu0 0
    %584 = vmatpush1.bf16.msra.mxu0 0
    %585 = vmatprep.subr.bf16.mxu0 0
    %586 = vmatpush1.bf16.msra.mxu0 0
    %587 = vmatprep.subr.bf16.mxu0 0
    %588 = vmatpush1.bf16.msra.mxu0 0
    %589 = vmatprep.subr.bf16.mxu0 0
    %590 = vmatpush1.bf16.msra.mxu0 0
    %591 = vmatprep.subr.bf16.mxu0 0
    %592 = vmatpush1.bf16.msra.mxu0 0
    %593 = vmatprep.subr.bf16.mxu0 0
    %594 = vmatpush1.bf16.msra.mxu0 0
    %595 = vmatprep.mubr.bf16.mxu0 0
    %596 = vmatmul.mubr.bf16.gmra.mrb[0].mxu0 %v561
    %v597 = vpop.f32.mrb[0].mxu0
    %v598 = vadd.f32 0.0, %v597
    %v599 = vpop.f32.mrb[0].mxu0
    %v600 = vpop.f32.mrb[0].mxu0
    %v601 = vpop.f32.mrb[0].mxu0
    %602 = vdwg.mxu0
    %v604 = vrot.slane %v598, 7
    %v605 = vrot.slane %v598, 1
    %v606 = vrot.slane %v598, 2
    %v607 = vrot.slane %v598, 3
    %v608 = vrot.slane %v598, 4
    %v609 = vrot.slane %v598, 5
    %v610 = vrot.slane %v598, 6
    %v619 = vadd.f32 %v206, %v604
    %v620 = vadd.f32 %v209, %v598
    %v621 = vadd.f32 %v214, %v605
    %v622 = vadd.f32 %v217, %v606
    %v623 = vadd.f32 %v222, %v607
    %v624 = vadd.f32 %v225, %v608
    %v625 = vadd.f32 %v230, %v609
    %v626 = vadd.f32 %v233, %v610
    %v627 = vxor.u32 %v619, 2147483648
    %v628 = vxor.u32 %v620, 2147483648
    %v629 = vxor.u32 %v621, 2147483648
    %v630 = vxor.u32 %v622, 2147483648
    %v631 = vxor.u32 %v623, 2147483648
    %v632 = vxor.u32 %v624, 2147483648
    %v633 = vxor.u32 %v625, 2147483648
    %v634 = vxor.u32 %v626, 2147483648
    %v635 = vmul.f32 %v627, 1.442695
    %v636 = vpow.pop %v635
    %v637 = vmul.f32 %v628, 1.442695
    %v638 = vpow.pop %v637
    %v639 = vmul.f32 %v629, 1.442695
    %v640 = vpow.pop %v639
    %v641 = vmul.f32 %v630, 1.442695
    %v642 = vpow.pop %v641
    %v643 = vmul.f32 %v631, 1.442695
    %v644 = vpow.pop %v643
    %v645 = vmul.f32 %v632, 1.442695
    %v646 = vpow.pop %v645
    %v647 = vmul.f32 %v633, 1.442695
    %v648 = vpow.pop %v647
    %v649 = vmul.f32 %v634, 1.442695
    %v650 = vpow.pop %v649
    %v651 = vadd.f32 %v636, 1.0
    %v652 = vadd.f32 %v638, 1.0
    %v653 = vadd.f32 %v640, 1.0
    %v654 = vadd.f32 %v642, 1.0
    %v655 = vadd.f32 %v644, 1.0
    %v656 = vadd.f32 %v646, 1.0
    %v657 = vadd.f32 %v648, 1.0
    %v658 = vadd.f32 %v650, 1.0
    %v659 = vrcp.pop %v651
    %v660 = vmul.f32 1.0, %v659
    %v661 = vrcp.pop %v652
    %v662 = vmul.f32 1.0, %v661
    %v663 = vrcp.pop %v653
    %v664 = vmul.f32 1.0, %v663
    %v665 = vrcp.pop %v654
    %v666 = vmul.f32 1.0, %v665
    %v667 = vrcp.pop %v655
    %v668 = vmul.f32 1.0, %v667
    %v669 = vrcp.pop %v656
    %v670 = vmul.f32 1.0, %v669
    %v671 = vrcp.pop %v657
    %v672 = vmul.f32 1.0, %v671
    %v673 = vrcp.pop %v658
    %v674 = vmul.f32 1.0, %v673
    %v675 = vtanh.pop %v619
    %v676 = vtanh.pop %v620
    %v677 = vtanh.pop %v621
    %v678 = vtanh.pop %v622
    %v679 = vtanh.pop %v623
    %v680 = vtanh.pop %v624
    %v681 = vtanh.pop %v625
    %v682 = vtanh.pop %v626
    %v691 = vrot.slane %v456, 7
    %v692 = vrot.slane %v457, 7
    %v693 = vrot.slane %v458, 7
    %v694 = vrot.slane %v459, 7
    %v695 = vrot.slane %v460, 7
    %v696 = vrot.slane %v461, 7
    %v697 = vrot.slane %v462, 7
    %v698 = vrot.slane %v463, 7
    %v707 = vmul.f32 %v660, %v691
    %v708 = vmul.f32 %v662, %v692
    %v709 = vmul.f32 %v664, %v693
    %v710 = vmul.f32 %v666, %v694
    %v711 = vmul.f32 %v668, %v695
    %v712 = vmul.f32 %v670, %v696
    %v713 = vmul.f32 %v672, %v697
    %v714 = vmul.f32 %v674, %v698
    %723 = vrot.lane.b32.xlu0 %v675, 64
    %v724 = vpop.permute.xlu0 %723
    %725 = vrot.lane.b32.xlu0 %v676, 64
    %v726 = vpop.permute.xlu0 %725
    %727 = vrot.lane.b32.xlu0 %v677, 64
    %v728 = vpop.permute.xlu0 %727
    %729 = vrot.lane.b32.xlu0 %v678, 64
    %v730 = vpop.permute.xlu0 %729
    %731 = vrot.lane.b32.xlu0 %v679, 64
    %v732 = vpop.permute.xlu0 %731
    %733 = vrot.lane.b32.xlu0 %v680, 64
    %v734 = vpop.permute.xlu0 %733
    %735 = vrot.lane.b32.xlu0 %v681, 64
    %v736 = vpop.permute.xlu0 %735
    %737 = vrot.lane.b32.xlu0 %v682, 64
    %v738 = vpop.permute.xlu0 %737
    %v747 = vmul.f32 %v660, %v724
    %v748 = vmul.f32 %v662, %v726
    %v749 = vmul.f32 %v664, %v728
    %v750 = vmul.f32 %v666, %v730
    %v751 = vmul.f32 %v668, %v732
    %v752 = vmul.f32 %v670, %v734
    %v753 = vmul.f32 %v672, %v736
    %v754 = vmul.f32 %v674, %v738
    %763 = vrot.lane.b32.xlu0 %v747, 32
    %v764 = vpop.permute.xlu0 %763
    %765 = vrot.lane.b32.xlu0 %v748, 32
    %v766 = vpop.permute.xlu0 %765
    %767 = vrot.lane.b32.xlu0 %v749, 32
    %v768 = vpop.permute.xlu0 %767
    %769 = vrot.lane.b32.xlu0 %v750, 32
    %v770 = vpop.permute.xlu0 %769
    %771 = vrot.lane.b32.xlu0 %v751, 32
    %v772 = vpop.permute.xlu0 %771
    %773 = vrot.lane.b32.xlu0 %v752, 32
    %v774 = vpop.permute.xlu0 %773
    %775 = vrot.lane.b32.xlu0 %v753, 32
    %v776 = vpop.permute.xlu0 %775
    %777 = vrot.lane.b32.xlu0 %v754, 32
    %v778 = vpop.permute.xlu0 %777
    %v787 = vadd.f32 %v707, %v764
    %v788 = vadd.f32 %v708, %v766
    %v789 = vadd.f32 %v709, %v768
    %v790 = vadd.f32 %v710, %v770
    %v791 = vadd.f32 %v711, %v772
    %v792 = vadd.f32 %v712, %v774
    %v793 = vadd.f32 %v713, %v776
    %v794 = vadd.f32 %v714, %v778
    %v795 = vtanh.pop %v787
    %v796 = vtanh.pop %v788
    %v797 = vtanh.pop %v789
    %v798 = vtanh.pop %v790
    %v799 = vtanh.pop %v791
    %v800 = vtanh.pop %v792
    %v801 = vtanh.pop %v793
    %v802 = vtanh.pop %v794
    %811 = vrot.lane.b32.xlu0 %v795, 64
    %v812 = vpop.permute.xlu0 %811
    %813 = vrot.lane.b32.xlu0 %v796, 64
    %v814 = vpop.permute.xlu0 %813
    %815 = vrot.lane.b32.xlu0 %v797, 64
    %v816 = vpop.permute.xlu0 %815
    %817 = vrot.lane.b32.xlu0 %v798, 64
    %v818 = vpop.permute.xlu0 %817
    %819 = vrot.lane.b32.xlu0 %v799, 64
    %v820 = vpop.permute.xlu0 %819
    %821 = vrot.lane.b32.xlu0 %v800, 64
    %v822 = vpop.permute.xlu0 %821
    %823 = vrot.lane.b32.xlu0 %v801, 64
    %v824 = vpop.permute.xlu0 %823
    %825 = vrot.lane.b32.xlu0 %v802, 64
    %v826 = vpop.permute.xlu0 %825
    %v835 = vmul.f32 %v660, %v812
    %v836 = vmul.f32 %v662, %v814
    %v837 = vmul.f32 %v664, %v816
    %v838 = vmul.f32 %v666, %v818
    %v839 = vmul.f32 %v668, %v820
    %v840 = vmul.f32 %v670, %v822
    %v841 = vmul.f32 %v672, %v824
    %v842 = vmul.f32 %v674, %v826
    %v843 = vpack.c.bf16 %v835, %v835
    %v844 = vpack.c.bf16 %v836, %v836
    %v845 = vpack.c.bf16 %v837, %v837
    %v846 = vpack.c.bf16 %v838, %v838
    %v847 = vpack.c.bf16 %v839, %v839
    %v848 = vpack.c.bf16 %v840, %v840
    %v849 = vpack.c.bf16 %v841, %v841
    %v850 = vpack.c.bf16 %v842, %v842
    %v859 = vunpack.c.l.b16 %v843
    %v860 = vunpack.c.l.b16 %v844
    %v861 = vunpack.c.l.b16 %v845
    %v862 = vunpack.c.l.b16 %v846
    %v863 = vunpack.c.l.b16 %v847
    %v864 = vunpack.c.l.b16 %v848
    %v865 = vunpack.c.l.b16 %v849
    %v866 = vunpack.c.l.b16 %v850
    %v867 = vrot.slane %v859, 1
    %v868 = vsel %vm537, %v860, %v867
    %v869 = vrot.slane %v861, 7
    %v870 = vsel %vm540, %v869, %v868
    %v871 = vrot.slane %v862, 6
    %v872 = vsel %vm543, %v871, %v870
    %v873 = vrot.slane %v863, 5
    %v874 = vsel %vm546, %v873, %v872
    %v875 = vrot.slane %v864, 4
    %v876 = vsel %vm549, %v875, %v874
    %v877 = vrot.slane %v865, 3
    %v878 = vsel %vm552, %v877, %v876
    %v879 = vrot.slane %v866, 2
    %v880 = vsel %vm555, %v879, %v878
    %v881 = vpack.c.b16 %v880, %v880
    %882 = vrot.lane.b32.xlu0 %v881, 32
    %v883 = vpop.permute.xlu0 %882
    %v885 = vsel %vm252, %v883, 0
    %887 = vmatprep.subr.bf16.mxu0 0
    %888 = vmatpush1.bf16.msra.mxu0 %v248
    %889 = vmatprep.subr.bf16.mxu0 0
    %890 = vmatpush1.bf16.msra.mxu0 %v249
    %891 = vmatprep.subr.bf16.mxu0 0
    %892 = vmatpush1.bf16.msra.mxu0 0
    %893 = vmatprep.subr.bf16.mxu0 0
    %894 = vmatpush1.bf16.msra.mxu0 0
    %895 = vmatprep.subr.bf16.mxu0 0
    %896 = vmatpush1.bf16.msra.mxu0 0
    %897 = vmatprep.subr.bf16.mxu0 0
    %898 = vmatpush1.bf16.msra.mxu0 0
    %899 = vmatprep.subr.bf16.mxu0 0
    %900 = vmatpush1.bf16.msra.mxu0 0
    %901 = vmatprep.subr.bf16.mxu0 0
    %902 = vmatpush1.bf16.msra.mxu0 0
    %903 = vmatprep.subr.bf16.mxu0 0
    %904 = vmatpush1.bf16.msra.mxu0 0
    %905 = vmatprep.subr.bf16.mxu0 0
    %906 = vmatpush1.bf16.msra.mxu0 0
    %907 = vmatprep.subr.bf16.mxu0 0
    %908 = vmatpush1.bf16.msra.mxu0 0
    %909 = vmatprep.subr.bf16.mxu0 0
    %910 = vmatpush1.bf16.msra.mxu0 0
    %911 = vmatprep.subr.bf16.mxu0 0
    %912 = vmatpush1.bf16.msra.mxu0 0
    %913 = vmatprep.subr.bf16.mxu0 0
    %914 = vmatpush1.bf16.msra.mxu0 0
    %915 = vmatprep.subr.bf16.mxu0 0
    %916 = vmatpush1.bf16.msra.mxu0 0
    %917 = vmatprep.subr.bf16.mxu0 0
    %918 = vmatpush1.bf16.msra.mxu0 0
    %919 = vmatprep.mubr.bf16.mxu0 0
    %920 = vmatmul.mubr.bf16.gmra.mrb[0].mxu0 %v885
    %v921 = vpop.f32.mrb[0].mxu0
    %v922 = vadd.f32 0.0, %v921
    %v923 = vpop.f32.mrb[0].mxu0
    %v924 = vpop.f32.mrb[0].mxu0
    %v925 = vpop.f32.mrb[0].mxu0
    %926 = vdwg.mxu0
    %v928 = vrot.slane %v922, 6
    %v929 = vrot.slane %v922, 7
    %v930 = vrot.slane %v922, 1
    %v931 = vrot.slane %v922, 2
    %v932 = vrot.slane %v922, 3
    %v933 = vrot.slane %v922, 4
    %v934 = vrot.slane %v922, 5
    %v943 = vadd.f32 %v206, %v928
    %v944 = vadd.f32 %v209, %v929
    %v945 = vadd.f32 %v214, %v922
    %v946 = vadd.f32 %v217, %v930
    %v947 = vadd.f32 %v222, %v931
    %v948 = vadd.f32 %v225, %v932
    %v949 = vadd.f32 %v230, %v933
    %v950 = vadd.f32 %v233, %v934
    %v951 = vxor.u32 %v943, 2147483648
    %v952 = vxor.u32 %v944, 2147483648
    %v953 = vxor.u32 %v945, 2147483648
    %v954 = vxor.u32 %v946, 2147483648
    %v955 = vxor.u32 %v947, 2147483648
    %v956 = vxor.u32 %v948, 2147483648
    %v957 = vxor.u32 %v949, 2147483648
    %v958 = vxor.u32 %v950, 2147483648
    %v959 = vmul.f32 %v951, 1.442695
    %v960 = vpow.pop %v959
    %v961 = vmul.f32 %v952, 1.442695
    %v962 = vpow.pop %v961
    %v963 = vmul.f32 %v953, 1.442695
    %v964 = vpow.pop %v963
    %v965 = vmul.f32 %v954, 1.442695
    %v966 = vpow.pop %v965
    %v967 = vmul.f32 %v955, 1.442695
    %v968 = vpow.pop %v967
    %v969 = vmul.f32 %v956, 1.442695
    %v970 = vpow.pop %v969
    %v971 = vmul.f32 %v957, 1.442695
    %v972 = vpow.pop %v971
    %v973 = vmul.f32 %v958, 1.442695
    %v974 = vpow.pop %v973
    %v975 = vadd.f32 %v960, 1.0
    %v976 = vadd.f32 %v962, 1.0
    %v977 = vadd.f32 %v964, 1.0
    %v978 = vadd.f32 %v966, 1.0
    %v979 = vadd.f32 %v968, 1.0
    %v980 = vadd.f32 %v970, 1.0
    %v981 = vadd.f32 %v972, 1.0
    %v982 = vadd.f32 %v974, 1.0
    %v983 = vrcp.pop %v975
    %v984 = vmul.f32 1.0, %v983
    %v985 = vrcp.pop %v976
    %v986 = vmul.f32 1.0, %v985
    %v987 = vrcp.pop %v977
    %v988 = vmul.f32 1.0, %v987
    %v989 = vrcp.pop %v978
    %v990 = vmul.f32 1.0, %v989
    %v991 = vrcp.pop %v979
    %v992 = vmul.f32 1.0, %v991
    %v993 = vrcp.pop %v980
    %v994 = vmul.f32 1.0, %v993
    %v995 = vrcp.pop %v981
    %v996 = vmul.f32 1.0, %v995
    %v997 = vrcp.pop %v982
    %v998 = vmul.f32 1.0, %v997
    %v999 = vtanh.pop %v943
    %v1000 = vtanh.pop %v944
    %v1001 = vtanh.pop %v945
    %v1002 = vtanh.pop %v946
    %v1003 = vtanh.pop %v947
    %v1004 = vtanh.pop %v948
    %v1005 = vtanh.pop %v949
    %v1006 = vtanh.pop %v950
    %v1015 = vrot.slane %v787, 7
    %v1016 = vrot.slane %v788, 7
    %v1017 = vrot.slane %v789, 7
    %v1018 = vrot.slane %v790, 7
    %v1019 = vrot.slane %v791, 7
    %v1020 = vrot.slane %v792, 7
    %v1021 = vrot.slane %v793, 7
    %v1022 = vrot.slane %v794, 7
    %v1031 = vmul.f32 %v984, %v1015
    %v1032 = vmul.f32 %v986, %v1016
    %v1033 = vmul.f32 %v988, %v1017
    %v1034 = vmul.f32 %v990, %v1018
    %v1035 = vmul.f32 %v992, %v1019
    %v1036 = vmul.f32 %v994, %v1020
    %v1037 = vmul.f32 %v996, %v1021
    %v1038 = vmul.f32 %v998, %v1022
    %1047 = vrot.lane.b32.xlu0 %v999, 64
    %v1048 = vpop.permute.xlu0 %1047
    %1049 = vrot.lane.b32.xlu0 %v1000, 64
    %v1050 = vpop.permute.xlu0 %1049
    %1051 = vrot.lane.b32.xlu0 %v1001, 64
    %v1052 = vpop.permute.xlu0 %1051
    %1053 = vrot.lane.b32.xlu0 %v1002, 64
    %v1054 = vpop.permute.xlu0 %1053
    %1055 = vrot.lane.b32.xlu0 %v1003, 64
    %v1056 = vpop.permute.xlu0 %1055
    %1057 = vrot.lane.b32.xlu0 %v1004, 64
    %v1058 = vpop.permute.xlu0 %1057
    %1059 = vrot.lane.b32.xlu0 %v1005, 64
    %v1060 = vpop.permute.xlu0 %1059
    %1061 = vrot.lane.b32.xlu0 %v1006, 64
    %v1062 = vpop.permute.xlu0 %1061
    %v1071 = vmul.f32 %v984, %v1048
    %v1072 = vmul.f32 %v986, %v1050
    %v1073 = vmul.f32 %v988, %v1052
    %v1074 = vmul.f32 %v990, %v1054
    %v1075 = vmul.f32 %v992, %v1056
    %v1076 = vmul.f32 %v994, %v1058
    %v1077 = vmul.f32 %v996, %v1060
    %v1078 = vmul.f32 %v998, %v1062
    %1087 = vrot.lane.b32.xlu0 %v1071, 32
    %v1088 = vpop.permute.xlu0 %1087
    %1089 = vrot.lane.b32.xlu0 %v1072, 32
    %v1090 = vpop.permute.xlu0 %1089
    %1091 = vrot.lane.b32.xlu0 %v1073, 32
    %v1092 = vpop.permute.xlu0 %1091
    %1093 = vrot.lane.b32.xlu0 %v1074, 32
    %v1094 = vpop.permute.xlu0 %1093
    %1095 = vrot.lane.b32.xlu0 %v1075, 32
    %v1096 = vpop.permute.xlu0 %1095
    %1097 = vrot.lane.b32.xlu0 %v1076, 32
    %v1098 = vpop.permute.xlu0 %1097
    %1099 = vrot.lane.b32.xlu0 %v1077, 32
    %v1100 = vpop.permute.xlu0 %1099
    %1101 = vrot.lane.b32.xlu0 %v1078, 32
    %v1102 = vpop.permute.xlu0 %1101
    %v1111 = vadd.f32 %v1031, %v1088
    %v1112 = vadd.f32 %v1032, %v1090
    %v1113 = vadd.f32 %v1033, %v1092
    %v1114 = vadd.f32 %v1034, %v1094
    %v1115 = vadd.f32 %v1035, %v1096
    %v1116 = vadd.f32 %v1036, %v1098
    %v1117 = vadd.f32 %v1037, %v1100
    %v1118 = vadd.f32 %v1038, %v1102
    %v1119 = vtanh.pop %v1111
    %v1120 = vtanh.pop %v1112
    %v1121 = vtanh.pop %v1113
    %v1122 = vtanh.pop %v1114
    %v1123 = vtanh.pop %v1115
    %v1124 = vtanh.pop %v1116
    %v1125 = vtanh.pop %v1117
    %v1126 = vtanh.pop %v1118
    %1135 = vrot.lane.b32.xlu0 %v1119, 64
    %v1136 = vpop.permute.xlu0 %1135
    %1137 = vrot.lane.b32.xlu0 %v1120, 64
    %v1138 = vpop.permute.xlu0 %1137
    %1139 = vrot.lane.b32.xlu0 %v1121, 64
    %v1140 = vpop.permute.xlu0 %1139
    %1141 = vrot.lane.b32.xlu0 %v1122, 64
    %v1142 = vpop.permute.xlu0 %1141
    %1143 = vrot.lane.b32.xlu0 %v1123, 64
    %v1144 = vpop.permute.xlu0 %1143
    %1145 = vrot.lane.b32.xlu0 %v1124, 64
    %v1146 = vpop.permute.xlu0 %1145
    %1147 = vrot.lane.b32.xlu0 %v1125, 64
    %v1148 = vpop.permute.xlu0 %1147
    %1149 = vrot.lane.b32.xlu0 %v1126, 64
    %v1150 = vpop.permute.xlu0 %1149
    %v1159 = vmul.f32 %v984, %v1136
    %v1160 = vmul.f32 %v986, %v1138
    %v1161 = vmul.f32 %v988, %v1140
    %v1162 = vmul.f32 %v990, %v1142
    %v1163 = vmul.f32 %v992, %v1144
    %v1164 = vmul.f32 %v994, %v1146
    %v1165 = vmul.f32 %v996, %v1148
    %v1166 = vmul.f32 %v998, %v1150
    %v1167 = vpack.c.bf16 %v1159, %v1159
    %v1168 = vpack.c.bf16 %v1160, %v1160
    %v1169 = vpack.c.bf16 %v1161, %v1161
    %v1170 = vpack.c.bf16 %v1162, %v1162
    %v1171 = vpack.c.bf16 %v1163, %v1163
    %v1172 = vpack.c.bf16 %v1164, %v1164
    %v1173 = vpack.c.bf16 %v1165, %v1165
    %v1174 = vpack.c.bf16 %v1166, %v1166
    %v1183 = vunpack.c.l.b16 %v1167
    %v1184 = vunpack.c.l.b16 %v1168
    %v1185 = vunpack.c.l.b16 %v1169
    %v1186 = vunpack.c.l.b16 %v1170
    %v1187 = vunpack.c.l.b16 %v1171
    %v1188 = vunpack.c.l.b16 %v1172
    %v1189 = vunpack.c.l.b16 %v1173
    %v1190 = vunpack.c.l.b16 %v1174
    %v1191 = vrot.slane %v1183, 2
    %v1192 = vrot.slane %v1184, 1
    %v1193 = vsel %vm537, %v1192, %v1191
    %v1194 = vsel %vm540, %v1185, %v1193
    %v1195 = vrot.slane %v1186, 7
    %v1196 = vsel %vm543, %v1195, %v1194
    %v1197 = vrot.slane %v1187, 6
    %v1198 = vsel %vm546, %v1197, %v1196
    %v1199 = vrot.slane %v1188, 5
    %v1200 = vsel %vm549, %v1199, %v1198
    %v1201 = vrot.slane %v1189, 4
    %v1202 = vsel %vm552, %v1201, %v1200
    %v1203 = vrot.slane %v1190, 3
    %v1204 = vsel %vm555, %v1203, %v1202
    %v1205 = vpack.c.b16 %v1204, %v1204
    %1206 = vrot.lane.b32.xlu0 %v1205, 32
    %v1207 = vpop.permute.xlu0 %1206
    %v1209 = vsel %vm252, %v1207, 0
    %1211 = vmatprep.subr.bf16.mxu0 0
    %1212 = vmatpush1.bf16.msra.mxu0 %v248
    %1213 = vmatprep.subr.bf16.mxu0 0
    %1214 = vmatpush1.bf16.msra.mxu0 %v249
    %1215 = vmatprep.subr.bf16.mxu0 0
    %1216 = vmatpush1.bf16.msra.mxu0 0
    %1217 = vmatprep.subr.bf16.mxu0 0
    %1218 = vmatpush1.bf16.msra.mxu0 0
    %1219 = vmatprep.subr.bf16.mxu0 0
    %1220 = vmatpush1.bf16.msra.mxu0 0
    %1221 = vmatprep.subr.bf16.mxu0 0
    %1222 = vmatpush1.bf16.msra.mxu0 0
    %1223 = vmatprep.subr.bf16.mxu0 0
    %1224 = vmatpush1.bf16.msra.mxu0 0
    %1225 = vmatprep.subr.bf16.mxu0 0
    %1226 = vmatpush1.bf16.msra.mxu0 0
    %1227 = vmatprep.subr.bf16.mxu0 0
    %1228 = vmatpush1.bf16.msra.mxu0 0
    %1229 = vmatprep.subr.bf16.mxu0 0
    %1230 = vmatpush1.bf16.msra.mxu0 0
    %1231 = vmatprep.subr.bf16.mxu0 0
    %1232 = vmatpush1.bf16.msra.mxu0 0
    %1233 = vmatprep.subr.bf16.mxu0 0
    %1234 = vmatpush1.bf16.msra.mxu0 0
    %1235 = vmatprep.subr.bf16.mxu0 0
    %1236 = vmatpush1.bf16.msra.mxu0 0
    %1237 = vmatprep.subr.bf16.mxu0 0
    %1238 = vmatpush1.bf16.msra.mxu0 0
    %1239 = vmatprep.subr.bf16.mxu0 0
    %1240 = vmatpush1.bf16.msra.mxu0 0
    %1241 = vmatprep.subr.bf16.mxu0 0
    %1242 = vmatpush1.bf16.msra.mxu0 0
    %1243 = vmatprep.mubr.bf16.mxu0 0
    %1244 = vmatmul.mubr.bf16.gmra.mrb[0].mxu0 %v1209
    %v1245 = vpop.f32.mrb[0].mxu0
    %v1246 = vadd.f32 0.0, %v1245
    %v1247 = vpop.f32.mrb[0].mxu0
    %v1248 = vpop.f32.mrb[0].mxu0
    %v1249 = vpop.f32.mrb[0].mxu0
    %1250 = vdwg.mxu0
    %v1252 = vrot.slane %v1246, 5
    %v1253 = vrot.slane %v1246, 6
    %v1254 = vrot.slane %v1246, 7
    %v1255 = vrot.slane %v1246, 1
    %v1256 = vrot.slane %v1246, 2
    %v1257 = vrot.slane %v1246, 3
    %v1258 = vrot.slane %v1246, 4
    %v1267 = vadd.f32 %v206, %v1252
    %v1268 = vadd.f32 %v209, %v1253
    %v1269 = vadd.f32 %v214, %v1254
    %v1270 = vadd.f32 %v217, %v1246
    %v1271 = vadd.f32 %v222, %v1255
    %v1272 = vadd.f32 %v225, %v1256
    %v1273 = vadd.f32 %v230, %v1257
    %v1274 = vadd.f32 %v233, %v1258
    %v1275 = vxor.u32 %v1267, 2147483648
    %v1276 = vxor.u32 %v1268, 2147483648
    %v1277 = vxor.u32 %v1269, 2147483648
    %v1278 = vxor.u32 %v1270, 2147483648
    %v1279 = vxor.u32 %v1271, 2147483648
    %v1280 = vxor.u32 %v1272, 2147483648
    %v1281 = vxor.u32 %v1273, 2147483648
    %v1282 = vxor.u32 %v1274, 2147483648
    %v1283 = vmul.f32 %v1275, 1.442695
    %v1284 = vpow.pop %v1283
    %v1285 = vmul.f32 %v1276, 1.442695
    %v1286 = vpow.pop %v1285
    %v1287 = vmul.f32 %v1277, 1.442695
    %v1288 = vpow.pop %v1287
    %v1289 = vmul.f32 %v1278, 1.442695
    %v1290 = vpow.pop %v1289
    %v1291 = vmul.f32 %v1279, 1.442695
    %v1292 = vpow.pop %v1291
    %v1293 = vmul.f32 %v1280, 1.442695
    %v1294 = vpow.pop %v1293
    %v1295 = vmul.f32 %v1281, 1.442695
    %v1296 = vpow.pop %v1295
    %v1297 = vmul.f32 %v1282, 1.442695
    %v1298 = vpow.pop %v1297
    %v1299 = vadd.f32 %v1284, 1.0
    %v1300 = vadd.f32 %v1286, 1.0
    %v1301 = vadd.f32 %v1288, 1.0
    %v1302 = vadd.f32 %v1290, 1.0
    %v1303 = vadd.f32 %v1292, 1.0
    %v1304 = vadd.f32 %v1294, 1.0
    %v1305 = vadd.f32 %v1296, 1.0
    %v1306 = vadd.f32 %v1298, 1.0
    %v1307 = vrcp.pop %v1299
    %v1308 = vmul.f32 1.0, %v1307
    %v1309 = vrcp.pop %v1300
    %v1310 = vmul.f32 1.0, %v1309
    %v1311 = vrcp.pop %v1301
    %v1312 = vmul.f32 1.0, %v1311
    %v1313 = vrcp.pop %v1302
    %v1314 = vmul.f32 1.0, %v1313
    %v1315 = vrcp.pop %v1303
    %v1316 = vmul.f32 1.0, %v1315
    %v1317 = vrcp.pop %v1304
    %v1318 = vmul.f32 1.0, %v1317
    %v1319 = vrcp.pop %v1305
    %v1320 = vmul.f32 1.0, %v1319
    %v1321 = vrcp.pop %v1306
    %v1322 = vmul.f32 1.0, %v1321
    %v1323 = vtanh.pop %v1267
    %v1324 = vtanh.pop %v1268
    %v1325 = vtanh.pop %v1269
    %v1326 = vtanh.pop %v1270
    %v1327 = vtanh.pop %v1271
    %v1328 = vtanh.pop %v1272
    %v1329 = vtanh.pop %v1273
    %v1330 = vtanh.pop %v1274
    %v1339 = vrot.slane %v1111, 7
    %v1340 = vrot.slane %v1112, 7
    %v1341 = vrot.slane %v1113, 7
    %v1342 = vrot.slane %v1114, 7
    %v1343 = vrot.slane %v1115, 7
    %v1344 = vrot.slane %v1116, 7
    %v1345 = vrot.slane %v1117, 7
    %v1346 = vrot.slane %v1118, 7
    %v1355 = vmul.f32 %v1308, %v1339
    %v1356 = vmul.f32 %v1310, %v1340
    %v1357 = vmul.f32 %v1312, %v1341
    %v1358 = vmul.f32 %v1314, %v1342
    %v1359 = vmul.f32 %v1316, %v1343
    %v1360 = vmul.f32 %v1318, %v1344
    %v1361 = vmul.f32 %v1320, %v1345
    %v1362 = vmul.f32 %v1322, %v1346
    %1371 = vrot.lane.b32.xlu0 %v1323, 64
    %v1372 = vpop.permute.xlu0 %1371
    %1373 = vrot.lane.b32.xlu0 %v1324, 64
    %v1374 = vpop.permute.xlu0 %1373
    %1375 = vrot.lane.b32.xlu0 %v1325, 64
    %v1376 = vpop.permute.xlu0 %1375
    %1377 = vrot.lane.b32.xlu0 %v1326, 64
    %v1378 = vpop.permute.xlu0 %1377
    %1379 = vrot.lane.b32.xlu0 %v1327, 64
    %v1380 = vpop.permute.xlu0 %1379
    %1381 = vrot.lane.b32.xlu0 %v1328, 64
    %v1382 = vpop.permute.xlu0 %1381
    %1383 = vrot.lane.b32.xlu0 %v1329, 64
    %v1384 = vpop.permute.xlu0 %1383
    %1385 = vrot.lane.b32.xlu0 %v1330, 64
    %v1386 = vpop.permute.xlu0 %1385
    %v1395 = vmul.f32 %v1308, %v1372
    %v1396 = vmul.f32 %v1310, %v1374
    %v1397 = vmul.f32 %v1312, %v1376
    %v1398 = vmul.f32 %v1314, %v1378
    %v1399 = vmul.f32 %v1316, %v1380
    %v1400 = vmul.f32 %v1318, %v1382
    %v1401 = vmul.f32 %v1320, %v1384
    %v1402 = vmul.f32 %v1322, %v1386
    %1411 = vrot.lane.b32.xlu0 %v1395, 32
    %v1412 = vpop.permute.xlu0 %1411
    %1413 = vrot.lane.b32.xlu0 %v1396, 32
    %v1414 = vpop.permute.xlu0 %1413
    %1415 = vrot.lane.b32.xlu0 %v1397, 32
    %v1416 = vpop.permute.xlu0 %1415
    %1417 = vrot.lane.b32.xlu0 %v1398, 32
    %v1418 = vpop.permute.xlu0 %1417
    %1419 = vrot.lane.b32.xlu0 %v1399, 32
    %v1420 = vpop.permute.xlu0 %1419
    %1421 = vrot.lane.b32.xlu0 %v1400, 32
    %v1422 = vpop.permute.xlu0 %1421
    %1423 = vrot.lane.b32.xlu0 %v1401, 32
    %v1424 = vpop.permute.xlu0 %1423
    %1425 = vrot.lane.b32.xlu0 %v1402, 32
    %v1426 = vpop.permute.xlu0 %1425
    %v1435 = vadd.f32 %v1355, %v1412
    %v1436 = vadd.f32 %v1356, %v1414
    %v1437 = vadd.f32 %v1357, %v1416
    %v1438 = vadd.f32 %v1358, %v1418
    %v1439 = vadd.f32 %v1359, %v1420
    %v1440 = vadd.f32 %v1360, %v1422
    %v1441 = vadd.f32 %v1361, %v1424
    %v1442 = vadd.f32 %v1362, %v1426
    %v1443 = vtanh.pop %v1435
    %v1444 = vtanh.pop %v1436
    %v1445 = vtanh.pop %v1437
    %v1446 = vtanh.pop %v1438
    %v1447 = vtanh.pop %v1439
    %v1448 = vtanh.pop %v1440
    %v1449 = vtanh.pop %v1441
    %v1450 = vtanh.pop %v1442
    %1459 = vrot.lane.b32.xlu0 %v1443, 64
    %v1460 = vpop.permute.xlu0 %1459
    %1461 = vrot.lane.b32.xlu0 %v1444, 64
    %v1462 = vpop.permute.xlu0 %1461
    %1463 = vrot.lane.b32.xlu0 %v1445, 64
    %v1464 = vpop.permute.xlu0 %1463
    %1465 = vrot.lane.b32.xlu0 %v1446, 64
    %v1466 = vpop.permute.xlu0 %1465
    %1467 = vrot.lane.b32.xlu0 %v1447, 64
    %v1468 = vpop.permute.xlu0 %1467
    %1469 = vrot.lane.b32.xlu0 %v1448, 64
    %v1470 = vpop.permute.xlu0 %1469
    %1471 = vrot.lane.b32.xlu0 %v1449, 64
    %v1472 = vpop.permute.xlu0 %1471
    %1473 = vrot.lane.b32.xlu0 %v1450, 64
    %v1474 = vpop.permute.xlu0 %1473
    %v1483 = vmul.f32 %v1308, %v1460
    %v1484 = vmul.f32 %v1310, %v1462
    %v1485 = vmul.f32 %v1312, %v1464
    %v1486 = vmul.f32 %v1314, %v1466
    %v1487 = vmul.f32 %v1316, %v1468
    %v1488 = vmul.f32 %v1318, %v1470
    %v1489 = vmul.f32 %v1320, %v1472
    %v1490 = vmul.f32 %v1322, %v1474
    %v1491 = vpack.c.bf16 %v1483, %v1483
    %v1492 = vpack.c.bf16 %v1484, %v1484
    %v1493 = vpack.c.bf16 %v1485, %v1485
    %v1494 = vpack.c.bf16 %v1486, %v1486
    %v1495 = vpack.c.bf16 %v1487, %v1487
    %v1496 = vpack.c.bf16 %v1488, %v1488
    %v1497 = vpack.c.bf16 %v1489, %v1489
    %v1498 = vpack.c.bf16 %v1490, %v1490
    %v1507 = vunpack.c.l.b16 %v1491
    %v1508 = vunpack.c.l.b16 %v1492
    %v1509 = vunpack.c.l.b16 %v1493
    %v1510 = vunpack.c.l.b16 %v1494
    %v1511 = vunpack.c.l.b16 %v1495
    %v1512 = vunpack.c.l.b16 %v1496
    %v1513 = vunpack.c.l.b16 %v1497
    %v1514 = vunpack.c.l.b16 %v1498
    %v1515 = vrot.slane %v1507, 3
    %v1516 = vrot.slane %v1508, 2
    %v1517 = vsel %vm537, %v1516, %v1515
    %v1518 = vrot.slane %v1509, 1
    %v1519 = vsel %vm540, %v1518, %v1517
    %v1520 = vsel %vm543, %v1510, %v1519
    %v1521 = vrot.slane %v1511, 7
    %v1522 = vsel %vm546, %v1521, %v1520
    %v1523 = vrot.slane %v1512, 6
    %v1524 = vsel %vm549, %v1523, %v1522
    %v1525 = vrot.slane %v1513, 5
    %v1526 = vsel %vm552, %v1525, %v1524
    %v1527 = vrot.slane %v1514, 4
    %v1528 = vsel %vm555, %v1527, %v1526
    %v1529 = vpack.c.b16 %v1528, %v1528
    %1530 = vrot.lane.b32.xlu0 %v1529, 32
    %v1531 = vpop.permute.xlu0 %1530
    %v1533 = vsel %vm252, %v1531, 0
    %1535 = vmatprep.subr.bf16.mxu0 0
    %1536 = vmatpush1.bf16.msra.mxu0 %v248
    %1537 = vmatprep.subr.bf16.mxu0 0
    %1538 = vmatpush1.bf16.msra.mxu0 %v249
    %1539 = vmatprep.subr.bf16.mxu0 0
    %1540 = vmatpush1.bf16.msra.mxu0 0
    %1541 = vmatprep.subr.bf16.mxu0 0
    %1542 = vmatpush1.bf16.msra.mxu0 0
    %1543 = vmatprep.subr.bf16.mxu0 0
    %1544 = vmatpush1.bf16.msra.mxu0 0
    %1545 = vmatprep.subr.bf16.mxu0 0
    %1546 = vmatpush1.bf16.msra.mxu0 0
    %1547 = vmatprep.subr.bf16.mxu0 0
    %1548 = vmatpush1.bf16.msra.mxu0 0
    %1549 = vmatprep.subr.bf16.mxu0 0
    %1550 = vmatpush1.bf16.msra.mxu0 0
    %1551 = vmatprep.subr.bf16.mxu0 0
    %1552 = vmatpush1.bf16.msra.mxu0 0
    %1553 = vmatprep.subr.bf16.mxu0 0
    %1554 = vmatpush1.bf16.msra.mxu0 0
    %1555 = vmatprep.subr.bf16.mxu0 0
    %1556 = vmatpush1.bf16.msra.mxu0 0
    %1557 = vmatprep.subr.bf16.mxu0 0
    %1558 = vmatpush1.bf16.msra.mxu0 0
    %1559 = vmatprep.subr.bf16.mxu0 0
    %1560 = vmatpush1.bf16.msra.mxu0 0
    %1561 = vmatprep.subr.bf16.mxu0 0
    %1562 = vmatpush1.bf16.msra.mxu0 0
    %1563 = vmatprep.subr.bf16.mxu0 0
    %1564 = vmatpush1.bf16.msra.mxu0 0
    %1565 = vmatprep.subr.bf16.mxu0 0
    %1566 = vmatpush1.bf16.msra.mxu0 0
    %1567 = vmatprep.mubr.bf16.mxu0 0
    %1568 = vmatmul.mubr.bf16.gmra.mrb[0].mxu0 %v1533
    %v1569 = vpop.f32.mrb[0].mxu0
    %v1570 = vadd.f32 0.0, %v1569
    %v1571 = vpop.f32.mrb[0].mxu0
    %v1572 = vpop.f32.mrb[0].mxu0
    %v1573 = vpop.f32.mrb[0].mxu0
    %1574 = vdwg.mxu0
    %v1576 = vrot.slane %v1570, 4
    %v1577 = vrot.slane %v1570, 5
    %v1578 = vrot.slane %v1570, 6
    %v1579 = vrot.slane %v1570, 7
    %v1580 = vrot.slane %v1570, 1
    %v1581 = vrot.slane %v1570, 2
    %v1582 = vrot.slane %v1570, 3
    %v1591 = vadd.f32 %v206, %v1576
    %v1592 = vadd.f32 %v209, %v1577
    %v1593 = vadd.f32 %v214, %v1578
    %v1594 = vadd.f32 %v217, %v1579
    %v1595 = vadd.f32 %v222, %v1570
    %v1596 = vadd.f32 %v225, %v1580
    %v1597 = vadd.f32 %v230, %v1581
    %v1598 = vadd.f32 %v233, %v1582
    %v1599 = vxor.u32 %v1591, 2147483648
    %v1600 = vxor.u32 %v1592, 2147483648
    %v1601 = vxor.u32 %v1593, 2147483648
    %v1602 = vxor.u32 %v1594, 2147483648
    %v1603 = vxor.u32 %v1595, 2147483648
    %v1604 = vxor.u32 %v1596, 2147483648
    %v1605 = vxor.u32 %v1597, 2147483648
    %v1606 = vxor.u32 %v1598, 2147483648
    %v1607 = vmul.f32 %v1599, 1.442695
    %v1608 = vpow.pop %v1607
    %v1609 = vmul.f32 %v1600, 1.442695
    %v1610 = vpow.pop %v1609
    %v1611 = vmul.f32 %v1601, 1.442695
    %v1612 = vpow.pop %v1611
    %v1613 = vmul.f32 %v1602, 1.442695
    %v1614 = vpow.pop %v1613
    %v1615 = vmul.f32 %v1603, 1.442695
    %v1616 = vpow.pop %v1615
    %v1617 = vmul.f32 %v1604, 1.442695
    %v1618 = vpow.pop %v1617
    %v1619 = vmul.f32 %v1605, 1.442695
    %v1620 = vpow.pop %v1619
    %v1621 = vmul.f32 %v1606, 1.442695
    %v1622 = vpow.pop %v1621
    %v1623 = vadd.f32 %v1608, 1.0
    %v1624 = vadd.f32 %v1610, 1.0
    %v1625 = vadd.f32 %v1612, 1.0
    %v1626 = vadd.f32 %v1614, 1.0
    %v1627 = vadd.f32 %v1616, 1.0
    %v1628 = vadd.f32 %v1618, 1.0
    %v1629 = vadd.f32 %v1620, 1.0
    %v1630 = vadd.f32 %v1622, 1.0
    %v1631 = vrcp.pop %v1623
    %v1632 = vmul.f32 1.0, %v1631
    %v1633 = vrcp.pop %v1624
    %v1634 = vmul.f32 1.0, %v1633
    %v1635 = vrcp.pop %v1625
    %v1636 = vmul.f32 1.0, %v1635
    %v1637 = vrcp.pop %v1626
    %v1638 = vmul.f32 1.0, %v1637
    %v1639 = vrcp.pop %v1627
    %v1640 = vmul.f32 1.0, %v1639
    %v1641 = vrcp.pop %v1628
    %v1642 = vmul.f32 1.0, %v1641
    %v1643 = vrcp.pop %v1629
    %v1644 = vmul.f32 1.0, %v1643
    %v1645 = vrcp.pop %v1630
    %v1646 = vmul.f32 1.0, %v1645
    %v1647 = vtanh.pop %v1591
    %v1648 = vtanh.pop %v1592
    %v1649 = vtanh.pop %v1593
    %v1650 = vtanh.pop %v1594
    %v1651 = vtanh.pop %v1595
    %v1652 = vtanh.pop %v1596
    %v1653 = vtanh.pop %v1597
    %v1654 = vtanh.pop %v1598
    %v1663 = vrot.slane %v1435, 7
    %v1664 = vrot.slane %v1436, 7
    %v1665 = vrot.slane %v1437, 7
    %v1666 = vrot.slane %v1438, 7
    %v1667 = vrot.slane %v1439, 7
    %v1668 = vrot.slane %v1440, 7
    %v1669 = vrot.slane %v1441, 7
    %v1670 = vrot.slane %v1442, 7
    %v1679 = vmul.f32 %v1632, %v1663
    %v1680 = vmul.f32 %v1634, %v1664
    %v1681 = vmul.f32 %v1636, %v1665
    %v1682 = vmul.f32 %v1638, %v1666
    %v1683 = vmul.f32 %v1640, %v1667
    %v1684 = vmul.f32 %v1642, %v1668
    %v1685 = vmul.f32 %v1644, %v1669
    %v1686 = vmul.f32 %v1646, %v1670
    %1695 = vrot.lane.b32.xlu0 %v1647, 64
    %v1696 = vpop.permute.xlu0 %1695
    %1697 = vrot.lane.b32.xlu0 %v1648, 64
    %v1698 = vpop.permute.xlu0 %1697
    %1699 = vrot.lane.b32.xlu0 %v1649, 64
    %v1700 = vpop.permute.xlu0 %1699
    %1701 = vrot.lane.b32.xlu0 %v1650, 64
    %v1702 = vpop.permute.xlu0 %1701
    %1703 = vrot.lane.b32.xlu0 %v1651, 64
    %v1704 = vpop.permute.xlu0 %1703
    %1705 = vrot.lane.b32.xlu0 %v1652, 64
    %v1706 = vpop.permute.xlu0 %1705
    %1707 = vrot.lane.b32.xlu0 %v1653, 64
    %v1708 = vpop.permute.xlu0 %1707
    %1709 = vrot.lane.b32.xlu0 %v1654, 64
    %v1710 = vpop.permute.xlu0 %1709
    %v1719 = vmul.f32 %v1632, %v1696
    %v1720 = vmul.f32 %v1634, %v1698
    %v1721 = vmul.f32 %v1636, %v1700
    %v1722 = vmul.f32 %v1638, %v1702
    %v1723 = vmul.f32 %v1640, %v1704
    %v1724 = vmul.f32 %v1642, %v1706
    %v1725 = vmul.f32 %v1644, %v1708
    %v1726 = vmul.f32 %v1646, %v1710
    %1735 = vrot.lane.b32.xlu0 %v1719, 32
    %v1736 = vpop.permute.xlu0 %1735
    %1737 = vrot.lane.b32.xlu0 %v1720, 32
    %v1738 = vpop.permute.xlu0 %1737
    %1739 = vrot.lane.b32.xlu0 %v1721, 32
    %v1740 = vpop.permute.xlu0 %1739
    %1741 = vrot.lane.b32.xlu0 %v1722, 32
    %v1742 = vpop.permute.xlu0 %1741
    %1743 = vrot.lane.b32.xlu0 %v1723, 32
    %v1744 = vpop.permute.xlu0 %1743
    %1745 = vrot.lane.b32.xlu0 %v1724, 32
    %v1746 = vpop.permute.xlu0 %1745
    %1747 = vrot.lane.b32.xlu0 %v1725, 32
    %v1748 = vpop.permute.xlu0 %1747
    %1749 = vrot.lane.b32.xlu0 %v1726, 32
    %v1750 = vpop.permute.xlu0 %1749
    %v1759 = vadd.f32 %v1679, %v1736
    %v1760 = vadd.f32 %v1680, %v1738
    %v1761 = vadd.f32 %v1681, %v1740
    %v1762 = vadd.f32 %v1682, %v1742
    %v1763 = vadd.f32 %v1683, %v1744
    %v1764 = vadd.f32 %v1684, %v1746
    %v1765 = vadd.f32 %v1685, %v1748
    %v1766 = vadd.f32 %v1686, %v1750
    %v1767 = vtanh.pop %v1759
    %v1768 = vtanh.pop %v1760
    %v1769 = vtanh.pop %v1761
    %v1770 = vtanh.pop %v1762
    %v1771 = vtanh.pop %v1763
    %v1772 = vtanh.pop %v1764
    %v1773 = vtanh.pop %v1765
    %v1774 = vtanh.pop %v1766
    %1783 = vrot.lane.b32.xlu0 %v1767, 64
    %v1784 = vpop.permute.xlu0 %1783
    %1785 = vrot.lane.b32.xlu0 %v1768, 64
    %v1786 = vpop.permute.xlu0 %1785
    %1787 = vrot.lane.b32.xlu0 %v1769, 64
    %v1788 = vpop.permute.xlu0 %1787
    %1789 = vrot.lane.b32.xlu0 %v1770, 64
    %v1790 = vpop.permute.xlu0 %1789
    %1791 = vrot.lane.b32.xlu0 %v1771, 64
    %v1792 = vpop.permute.xlu0 %1791
    %1793 = vrot.lane.b32.xlu0 %v1772, 64
    %v1794 = vpop.permute.xlu0 %1793
    %1795 = vrot.lane.b32.xlu0 %v1773, 64
    %v1796 = vpop.permute.xlu0 %1795
    %1797 = vrot.lane.b32.xlu0 %v1774, 64
    %v1798 = vpop.permute.xlu0 %1797
    %v1807 = vmul.f32 %v1632, %v1784
    %v1808 = vmul.f32 %v1634, %v1786
    %v1809 = vmul.f32 %v1636, %v1788
    %v1810 = vmul.f32 %v1638, %v1790
    %v1811 = vmul.f32 %v1640, %v1792
    %v1812 = vmul.f32 %v1642, %v1794
    %v1813 = vmul.f32 %v1644, %v1796
    %v1814 = vmul.f32 %v1646, %v1798
    %v1815 = vpack.c.bf16 %v1807, %v1807
    %v1816 = vpack.c.bf16 %v1808, %v1808
    %v1817 = vpack.c.bf16 %v1809, %v1809
    %v1818 = vpack.c.bf16 %v1810, %v1810
    %v1819 = vpack.c.bf16 %v1811, %v1811
    %v1820 = vpack.c.bf16 %v1812, %v1812
    %v1821 = vpack.c.bf16 %v1813, %v1813
    %v1822 = vpack.c.bf16 %v1814, %v1814
    %v1831 = vunpack.c.l.b16 %v1815
    %v1832 = vunpack.c.l.b16 %v1816
    %v1833 = vunpack.c.l.b16 %v1817
    %v1834 = vunpack.c.l.b16 %v1818
    %v1835 = vunpack.c.l.b16 %v1819
    %v1836 = vunpack.c.l.b16 %v1820
    %v1837 = vunpack.c.l.b16 %v1821
    %v1838 = vunpack.c.l.b16 %v1822
    %v1839 = vrot.slane %v1831, 4
    %v1840 = vrot.slane %v1832, 3
    %v1841 = vsel %vm537, %v1840, %v1839
    %v1842 = vrot.slane %v1833, 2
    %v1843 = vsel %vm540, %v1842, %v1841
    %v1844 = vrot.slane %v1834, 1
    %v1845 = vsel %vm543, %v1844, %v1843
    %v1846 = vsel %vm546, %v1835, %v1845
    %v1847 = vrot.slane %v1836, 7
    %v1848 = vsel %vm549, %v1847, %v1846
    %v1849 = vrot.slane %v1837, 6
    %v1850 = vsel %vm552, %v1849, %v1848
    %v1851 = vrot.slane %v1838, 5
    %v1852 = vsel %vm555, %v1851, %v1850
    %v1853 = vpack.c.b16 %v1852, %v1852
    %1854 = vrot.lane.b32.xlu0 %v1853, 32
    %v1855 = vpop.permute.xlu0 %1854
    %v1857 = vsel %vm252, %v1855, 0
    %1859 = vmatprep.subr.bf16.mxu0 0
    %1860 = vmatpush1.bf16.msra.mxu0 %v248
    %1861 = vmatprep.subr.bf16.mxu0 0
    %1862 = vmatpush1.bf16.msra.mxu0 %v249
    %1863 = vmatprep.subr.bf16.mxu0 0
    %1864 = vmatpush1.bf16.msra.mxu0 0
    %1865 = vmatprep.subr.bf16.mxu0 0
    %1866 = vmatpush1.bf16.msra.mxu0 0
    %1867 = vmatprep.subr.bf16.mxu0 0
    %1868 = vmatpush1.bf16.msra.mxu0 0
    %1869 = vmatprep.subr.bf16.mxu0 0
    %1870 = vmatpush1.bf16.msra.mxu0 0
    %1871 = vmatprep.subr.bf16.mxu0 0
    %1872 = vmatpush1.bf16.msra.mxu0 0
    %1873 = vmatprep.subr.bf16.mxu0 0
    %1874 = vmatpush1.bf16.msra.mxu0 0
    %1875 = vmatprep.subr.bf16.mxu0 0
    %1876 = vmatpush1.bf16.msra.mxu0 0
    %1877 = vmatprep.subr.bf16.mxu0 0
    %1878 = vmatpush1.bf16.msra.mxu0 0
    %1879 = vmatprep.subr.bf16.mxu0 0
    %1880 = vmatpush1.bf16.msra.mxu0 0
    %1881 = vmatprep.subr.bf16.mxu0 0
    %1882 = vmatpush1.bf16.msra.mxu0 0
    %1883 = vmatprep.subr.bf16.mxu0 0
    %1884 = vmatpush1.bf16.msra.mxu0 0
    %1885 = vmatprep.subr.bf16.mxu0 0
    %1886 = vmatpush1.bf16.msra.mxu0 0
    %1887 = vmatprep.subr.bf16.mxu0 0
    %1888 = vmatpush1.bf16.msra.mxu0 0
    %1889 = vmatprep.subr.bf16.mxu0 0
    %1890 = vmatpush1.bf16.msra.mxu0 0
    %1891 = vmatprep.mubr.bf16.mxu0 0
    %1892 = vmatmul.mubr.bf16.gmra.mrb[0].mxu0 %v1857
    %v1893 = vpop.f32.mrb[0].mxu0
    %v1894 = vadd.f32 0.0, %v1893
    %v1895 = vpop.f32.mrb[0].mxu0
    %v1896 = vpop.f32.mrb[0].mxu0
    %v1897 = vpop.f32.mrb[0].mxu0
    %1898 = vdwg.mxu0
    %v1900 = vrot.slane %v1894, 3
    %v1901 = vrot.slane %v1894, 4
    %v1902 = vrot.slane %v1894, 5
    %v1903 = vrot.slane %v1894, 6
    %v1904 = vrot.slane %v1894, 7
    %v1905 = vrot.slane %v1894, 1
    %v1906 = vrot.slane %v1894, 2
    %v1915 = vadd.f32 %v206, %v1900
    %v1916 = vadd.f32 %v209, %v1901
    %v1917 = vadd.f32 %v214, %v1902
    %v1918 = vadd.f32 %v217, %v1903
    %v1919 = vadd.f32 %v222, %v1904
    %v1920 = vadd.f32 %v225, %v1894
    %v1921 = vadd.f32 %v230, %v1905
    %v1922 = vadd.f32 %v233, %v1906
    %v1923 = vxor.u32 %v1915, 2147483648
    %v1924 = vxor.u32 %v1916, 2147483648
    %v1925 = vxor.u32 %v1917, 2147483648
    %v1926 = vxor.u32 %v1918, 2147483648
    %v1927 = vxor.u32 %v1919, 2147483648
    %v1928 = vxor.u32 %v1920, 2147483648
    %v1929 = vxor.u32 %v1921, 2147483648
    %v1930 = vxor.u32 %v1922, 2147483648
    %v1931 = vmul.f32 %v1923, 1.442695
    %v1932 = vpow.pop %v1931
    %v1933 = vmul.f32 %v1924, 1.442695
    %v1934 = vpow.pop %v1933
    %v1935 = vmul.f32 %v1925, 1.442695
    %v1936 = vpow.pop %v1935
    %v1937 = vmul.f32 %v1926, 1.442695
    %v1938 = vpow.pop %v1937
    %v1939 = vmul.f32 %v1927, 1.442695
    %v1940 = vpow.pop %v1939
    %v1941 = vmul.f32 %v1928, 1.442695
    %v1942 = vpow.pop %v1941
    %v1943 = vmul.f32 %v1929, 1.442695
    %v1944 = vpow.pop %v1943
    %v1945 = vmul.f32 %v1930, 1.442695
    %v1946 = vpow.pop %v1945
    %v1947 = vadd.f32 %v1932, 1.0
    %v1948 = vadd.f32 %v1934, 1.0
    %v1949 = vadd.f32 %v1936, 1.0
    %v1950 = vadd.f32 %v1938, 1.0
    %v1951 = vadd.f32 %v1940, 1.0
    %v1952 = vadd.f32 %v1942, 1.0
    %v1953 = vadd.f32 %v1944, 1.0
    %v1954 = vadd.f32 %v1946, 1.0
    %v1955 = vrcp.pop %v1947
    %v1956 = vmul.f32 1.0, %v1955
    %v1957 = vrcp.pop %v1948
    %v1958 = vmul.f32 1.0, %v1957
    %v1959 = vrcp.pop %v1949
    %v1960 = vmul.f32 1.0, %v1959
    %v1961 = vrcp.pop %v1950
    %v1962 = vmul.f32 1.0, %v1961
    %v1963 = vrcp.pop %v1951
    %v1964 = vmul.f32 1.0, %v1963
    %v1965 = vrcp.pop %v1952
    %v1966 = vmul.f32 1.0, %v1965
    %v1967 = vrcp.pop %v1953
    %v1968 = vmul.f32 1.0, %v1967
    %v1969 = vrcp.pop %v1954
    %v1970 = vmul.f32 1.0, %v1969
    %v1971 = vtanh.pop %v1915
    %v1972 = vtanh.pop %v1916
    %v1973 = vtanh.pop %v1917
    %v1974 = vtanh.pop %v1918
    %v1975 = vtanh.pop %v1919
    %v1976 = vtanh.pop %v1920
    %v1977 = vtanh.pop %v1921
    %v1978 = vtanh.pop %v1922
    %v1987 = vrot.slane %v1759, 7
    %v1988 = vrot.slane %v1760, 7
    %v1989 = vrot.slane %v1761, 7
    %v1990 = vrot.slane %v1762, 7
    %v1991 = vrot.slane %v1763, 7
    %v1992 = vrot.slane %v1764, 7
    %v1993 = vrot.slane %v1765, 7
    %v1994 = vrot.slane %v1766, 7
    %v2003 = vmul.f32 %v1956, %v1987
    %v2004 = vmul.f32 %v1958, %v1988
    %v2005 = vmul.f32 %v1960, %v1989
    %v2006 = vmul.f32 %v1962, %v1990
    %v2007 = vmul.f32 %v1964, %v1991
    %v2008 = vmul.f32 %v1966, %v1992
    %v2009 = vmul.f32 %v1968, %v1993
    %v2010 = vmul.f32 %v1970, %v1994
    %2019 = vrot.lane.b32.xlu0 %v1971, 64
    %v2020 = vpop.permute.xlu0 %2019
    %2021 = vrot.lane.b32.xlu0 %v1972, 64
    %v2022 = vpop.permute.xlu0 %2021
    %2023 = vrot.lane.b32.xlu0 %v1973, 64
    %v2024 = vpop.permute.xlu0 %2023
    %2025 = vrot.lane.b32.xlu0 %v1974, 64
    %v2026 = vpop.permute.xlu0 %2025
    %2027 = vrot.lane.b32.xlu0 %v1975, 64
    %v2028 = vpop.permute.xlu0 %2027
    %2029 = vrot.lane.b32.xlu0 %v1976, 64
    %v2030 = vpop.permute.xlu0 %2029
    %2031 = vrot.lane.b32.xlu0 %v1977, 64
    %v2032 = vpop.permute.xlu0 %2031
    %2033 = vrot.lane.b32.xlu0 %v1978, 64
    %v2034 = vpop.permute.xlu0 %2033
    %v2043 = vmul.f32 %v1956, %v2020
    %v2044 = vmul.f32 %v1958, %v2022
    %v2045 = vmul.f32 %v1960, %v2024
    %v2046 = vmul.f32 %v1962, %v2026
    %v2047 = vmul.f32 %v1964, %v2028
    %v2048 = vmul.f32 %v1966, %v2030
    %v2049 = vmul.f32 %v1968, %v2032
    %v2050 = vmul.f32 %v1970, %v2034
    %2059 = vrot.lane.b32.xlu0 %v2043, 32
    %v2060 = vpop.permute.xlu0 %2059
    %2061 = vrot.lane.b32.xlu0 %v2044, 32
    %v2062 = vpop.permute.xlu0 %2061
    %2063 = vrot.lane.b32.xlu0 %v2045, 32
    %v2064 = vpop.permute.xlu0 %2063
    %2065 = vrot.lane.b32.xlu0 %v2046, 32
    %v2066 = vpop.permute.xlu0 %2065
    %2067 = vrot.lane.b32.xlu0 %v2047, 32
    %v2068 = vpop.permute.xlu0 %2067
    %2069 = vrot.lane.b32.xlu0 %v2048, 32
    %v2070 = vpop.permute.xlu0 %2069
    %2071 = vrot.lane.b32.xlu0 %v2049, 32
    %v2072 = vpop.permute.xlu0 %2071
    %2073 = vrot.lane.b32.xlu0 %v2050, 32
    %v2074 = vpop.permute.xlu0 %2073
    %v2083 = vadd.f32 %v2003, %v2060
    %v2084 = vadd.f32 %v2004, %v2062
    %v2085 = vadd.f32 %v2005, %v2064
    %v2086 = vadd.f32 %v2006, %v2066
    %v2087 = vadd.f32 %v2007, %v2068
    %v2088 = vadd.f32 %v2008, %v2070
    %v2089 = vadd.f32 %v2009, %v2072
    %v2090 = vadd.f32 %v2010, %v2074
    %v2091 = vtanh.pop %v2083
    %v2092 = vtanh.pop %v2084
    %v2093 = vtanh.pop %v2085
    %v2094 = vtanh.pop %v2086
    %v2095 = vtanh.pop %v2087
    %v2096 = vtanh.pop %v2088
    %v2097 = vtanh.pop %v2089
    %v2098 = vtanh.pop %v2090
    %2107 = vrot.lane.b32.xlu0 %v2091, 64
    %v2108 = vpop.permute.xlu0 %2107
    %2109 = vrot.lane.b32.xlu0 %v2092, 64
    %v2110 = vpop.permute.xlu0 %2109
    %2111 = vrot.lane.b32.xlu0 %v2093, 64
    %v2112 = vpop.permute.xlu0 %2111
    %2113 = vrot.lane.b32.xlu0 %v2094, 64
    %v2114 = vpop.permute.xlu0 %2113
    %2115 = vrot.lane.b32.xlu0 %v2095, 64
    %v2116 = vpop.permute.xlu0 %2115
    %2117 = vrot.lane.b32.xlu0 %v2096, 64
    %v2118 = vpop.permute.xlu0 %2117
    %2119 = vrot.lane.b32.xlu0 %v2097, 64
    %v2120 = vpop.permute.xlu0 %2119
    %2121 = vrot.lane.b32.xlu0 %v2098, 64
    %v2122 = vpop.permute.xlu0 %2121
    %v2131 = vmul.f32 %v1956, %v2108
    %v2132 = vmul.f32 %v1958, %v2110
    %v2133 = vmul.f32 %v1960, %v2112
    %v2134 = vmul.f32 %v1962, %v2114
    %v2135 = vmul.f32 %v1964, %v2116
    %v2136 = vmul.f32 %v1966, %v2118
    %v2137 = vmul.f32 %v1968, %v2120
    %v2138 = vmul.f32 %v1970, %v2122
    %v2139 = vpack.c.bf16 %v2131, %v2131
    %v2140 = vpack.c.bf16 %v2132, %v2132
    %v2141 = vpack.c.bf16 %v2133, %v2133
    %v2142 = vpack.c.bf16 %v2134, %v2134
    %v2143 = vpack.c.bf16 %v2135, %v2135
    %v2144 = vpack.c.bf16 %v2136, %v2136
    %v2145 = vpack.c.bf16 %v2137, %v2137
    %v2146 = vpack.c.bf16 %v2138, %v2138
    %v2155 = vunpack.c.l.b16 %v2139
    %v2156 = vunpack.c.l.b16 %v2140
    %v2157 = vunpack.c.l.b16 %v2141
    %v2158 = vunpack.c.l.b16 %v2142
    %v2159 = vunpack.c.l.b16 %v2143
    %v2160 = vunpack.c.l.b16 %v2144
    %v2161 = vunpack.c.l.b16 %v2145
    %v2162 = vunpack.c.l.b16 %v2146
    %v2163 = vrot.slane %v2155, 5
    %v2164 = vrot.slane %v2156, 4
    %v2165 = vsel %vm537, %v2164, %v2163
    %v2166 = vrot.slane %v2157, 3
    %v2167 = vsel %vm540, %v2166, %v2165
    %v2168 = vrot.slane %v2158, 2
    %v2169 = vsel %vm543, %v2168, %v2167
    %v2170 = vrot.slane %v2159, 1
    %v2171 = vsel %vm546, %v2170, %v2169
    %v2172 = vsel %vm549, %v2160, %v2171
    %v2173 = vrot.slane %v2161, 7
    %v2174 = vsel %vm552, %v2173, %v2172
    %v2175 = vrot.slane %v2162, 6
    %v2176 = vsel %vm555, %v2175, %v2174
    %v2177 = vpack.c.b16 %v2176, %v2176
    %2178 = vrot.lane.b32.xlu0 %v2177, 32
    %v2179 = vpop.permute.xlu0 %2178
    %v2181 = vsel %vm252, %v2179, 0
    %2183 = vmatprep.subr.bf16.mxu0 0
    %2184 = vmatpush1.bf16.msra.mxu0 %v248
    %2185 = vmatprep.subr.bf16.mxu0 0
    %2186 = vmatpush1.bf16.msra.mxu0 %v249
    %2187 = vmatprep.subr.bf16.mxu0 0
    %2188 = vmatpush1.bf16.msra.mxu0 0
    %2189 = vmatprep.subr.bf16.mxu0 0
    %2190 = vmatpush1.bf16.msra.mxu0 0
    %2191 = vmatprep.subr.bf16.mxu0 0
    %2192 = vmatpush1.bf16.msra.mxu0 0
    %2193 = vmatprep.subr.bf16.mxu0 0
    %2194 = vmatpush1.bf16.msra.mxu0 0
    %2195 = vmatprep.subr.bf16.mxu0 0
    %2196 = vmatpush1.bf16.msra.mxu0 0
    %2197 = vmatprep.subr.bf16.mxu0 0
    %2198 = vmatpush1.bf16.msra.mxu0 0
    %2199 = vmatprep.subr.bf16.mxu0 0
    %2200 = vmatpush1.bf16.msra.mxu0 0
    %2201 = vmatprep.subr.bf16.mxu0 0
    %2202 = vmatpush1.bf16.msra.mxu0 0
    %2203 = vmatprep.subr.bf16.mxu0 0
    %2204 = vmatpush1.bf16.msra.mxu0 0
    %2205 = vmatprep.subr.bf16.mxu0 0
    %2206 = vmatpush1.bf16.msra.mxu0 0
    %2207 = vmatprep.subr.bf16.mxu0 0
    %2208 = vmatpush1.bf16.msra.mxu0 0
    %2209 = vmatprep.subr.bf16.mxu0 0
    %2210 = vmatpush1.bf16.msra.mxu0 0
    %2211 = vmatprep.subr.bf16.mxu0 0
    %2212 = vmatpush1.bf16.msra.mxu0 0
    %2213 = vmatprep.subr.bf16.mxu0 0
    %2214 = vmatpush1.bf16.msra.mxu0 0
    %2215 = vmatprep.mubr.bf16.mxu0 0
    %2216 = vmatmul.mubr.bf16.gmra.mrb[0].mxu0 %v2181
    %v2217 = vpop.f32.mrb[0].mxu0
    %v2218 = vadd.f32 0.0, %v2217
    %v2219 = vpop.f32.mrb[0].mxu0
    %v2220 = vpop.f32.mrb[0].mxu0
    %v2221 = vpop.f32.mrb[0].mxu0
    %2222 = vdwg.mxu0
    %v2224 = vrot.slane %v2218, 2
    %v2225 = vrot.slane %v2218, 3
    %v2226 = vrot.slane %v2218, 4
    %v2227 = vrot.slane %v2218, 5
    %v2228 = vrot.slane %v2218, 6
    %v2229 = vrot.slane %v2218, 7
    %v2230 = vrot.slane %v2218, 1
    %v2239 = vadd.f32 %v206, %v2224
    %v2240 = vadd.f32 %v209, %v2225
    %v2241 = vadd.f32 %v214, %v2226
    %v2242 = vadd.f32 %v217, %v2227
    %v2243 = vadd.f32 %v222, %v2228
    %v2244 = vadd.f32 %v225, %v2229
    %v2245 = vadd.f32 %v230, %v2218
    %v2246 = vadd.f32 %v233, %v2230
    %v2247 = vxor.u32 %v2239, 2147483648
    %v2248 = vxor.u32 %v2240, 2147483648
    %v2249 = vxor.u32 %v2241, 2147483648
    %v2250 = vxor.u32 %v2242, 2147483648
    %v2251 = vxor.u32 %v2243, 2147483648
    %v2252 = vxor.u32 %v2244, 2147483648
    %v2253 = vxor.u32 %v2245, 2147483648
    %v2254 = vxor.u32 %v2246, 2147483648
    %v2255 = vmul.f32 %v2247, 1.442695
    %v2256 = vpow.pop %v2255
    %v2257 = vmul.f32 %v2248, 1.442695
    %v2258 = vpow.pop %v2257
    %v2259 = vmul.f32 %v2249, 1.442695
    %v2260 = vpow.pop %v2259
    %v2261 = vmul.f32 %v2250, 1.442695
    %v2262 = vpow.pop %v2261
    %v2263 = vmul.f32 %v2251, 1.442695
    %v2264 = vpow.pop %v2263
    %v2265 = vmul.f32 %v2252, 1.442695
    %v2266 = vpow.pop %v2265
    %v2267 = vmul.f32 %v2253, 1.442695
    %v2268 = vpow.pop %v2267
    %v2269 = vmul.f32 %v2254, 1.442695
    %v2270 = vpow.pop %v2269
    %v2271 = vadd.f32 %v2256, 1.0
    %v2272 = vadd.f32 %v2258, 1.0
    %v2273 = vadd.f32 %v2260, 1.0
    %v2274 = vadd.f32 %v2262, 1.0
    %v2275 = vadd.f32 %v2264, 1.0
    %v2276 = vadd.f32 %v2266, 1.0
    %v2277 = vadd.f32 %v2268, 1.0
    %v2278 = vadd.f32 %v2270, 1.0
    %v2279 = vrcp.pop %v2271
    %v2280 = vmul.f32 1.0, %v2279
    %v2281 = vrcp.pop %v2272
    %v2282 = vmul.f32 1.0, %v2281
    %v2283 = vrcp.pop %v2273
    %v2284 = vmul.f32 1.0, %v2283
    %v2285 = vrcp.pop %v2274
    %v2286 = vmul.f32 1.0, %v2285
    %v2287 = vrcp.pop %v2275
    %v2288 = vmul.f32 1.0, %v2287
    %v2289 = vrcp.pop %v2276
    %v2290 = vmul.f32 1.0, %v2289
    %v2291 = vrcp.pop %v2277
    %v2292 = vmul.f32 1.0, %v2291
    %v2293 = vrcp.pop %v2278
    %v2294 = vmul.f32 1.0, %v2293
    %v2295 = vtanh.pop %v2239
    %v2296 = vtanh.pop %v2240
    %v2297 = vtanh.pop %v2241
    %v2298 = vtanh.pop %v2242
    %v2299 = vtanh.pop %v2243
    %v2300 = vtanh.pop %v2244
    %v2301 = vtanh.pop %v2245
    %v2302 = vtanh.pop %v2246
    %v2311 = vrot.slane %v2083, 7
    %v2312 = vrot.slane %v2084, 7
    %v2313 = vrot.slane %v2085, 7
    %v2314 = vrot.slane %v2086, 7
    %v2315 = vrot.slane %v2087, 7
    %v2316 = vrot.slane %v2088, 7
    %v2317 = vrot.slane %v2089, 7
    %v2318 = vrot.slane %v2090, 7
    %v2327 = vmul.f32 %v2280, %v2311
    %v2328 = vmul.f32 %v2282, %v2312
    %v2329 = vmul.f32 %v2284, %v2313
    %v2330 = vmul.f32 %v2286, %v2314
    %v2331 = vmul.f32 %v2288, %v2315
    %v2332 = vmul.f32 %v2290, %v2316
    %v2333 = vmul.f32 %v2292, %v2317
    %v2334 = vmul.f32 %v2294, %v2318
    %2343 = vrot.lane.b32.xlu0 %v2295, 64
    %v2344 = vpop.permute.xlu0 %2343
    %2345 = vrot.lane.b32.xlu0 %v2296, 64
    %v2346 = vpop.permute.xlu0 %2345
    %2347 = vrot.lane.b32.xlu0 %v2297, 64
    %v2348 = vpop.permute.xlu0 %2347
    %2349 = vrot.lane.b32.xlu0 %v2298, 64
    %v2350 = vpop.permute.xlu0 %2349
    %2351 = vrot.lane.b32.xlu0 %v2299, 64
    %v2352 = vpop.permute.xlu0 %2351
    %2353 = vrot.lane.b32.xlu0 %v2300, 64
    %v2354 = vpop.permute.xlu0 %2353
    %2355 = vrot.lane.b32.xlu0 %v2301, 64
    %v2356 = vpop.permute.xlu0 %2355
    %2357 = vrot.lane.b32.xlu0 %v2302, 64
    %v2358 = vpop.permute.xlu0 %2357
    %v2367 = vmul.f32 %v2280, %v2344
    %v2368 = vmul.f32 %v2282, %v2346
    %v2369 = vmul.f32 %v2284, %v2348
    %v2370 = vmul.f32 %v2286, %v2350
    %v2371 = vmul.f32 %v2288, %v2352
    %v2372 = vmul.f32 %v2290, %v2354
    %v2373 = vmul.f32 %v2292, %v2356
    %v2374 = vmul.f32 %v2294, %v2358
    %2383 = vrot.lane.b32.xlu0 %v2367, 32
    %v2384 = vpop.permute.xlu0 %2383
    %2385 = vrot.lane.b32.xlu0 %v2368, 32
    %v2386 = vpop.permute.xlu0 %2385
    %2387 = vrot.lane.b32.xlu0 %v2369, 32
    %v2388 = vpop.permute.xlu0 %2387
    %2389 = vrot.lane.b32.xlu0 %v2370, 32
    %v2390 = vpop.permute.xlu0 %2389
    %2391 = vrot.lane.b32.xlu0 %v2371, 32
    %v2392 = vpop.permute.xlu0 %2391
    %2393 = vrot.lane.b32.xlu0 %v2372, 32
    %v2394 = vpop.permute.xlu0 %2393
    %2395 = vrot.lane.b32.xlu0 %v2373, 32
    %v2396 = vpop.permute.xlu0 %2395
    %2397 = vrot.lane.b32.xlu0 %v2374, 32
    %v2398 = vpop.permute.xlu0 %2397
    %v2407 = vadd.f32 %v2327, %v2384
    %v2408 = vadd.f32 %v2328, %v2386
    %v2409 = vadd.f32 %v2329, %v2388
    %v2410 = vadd.f32 %v2330, %v2390
    %v2411 = vadd.f32 %v2331, %v2392
    %v2412 = vadd.f32 %v2332, %v2394
    %v2413 = vadd.f32 %v2333, %v2396
    %v2414 = vadd.f32 %v2334, %v2398
    %v2415 = vtanh.pop %v2407
    %v2416 = vtanh.pop %v2408
    %v2417 = vtanh.pop %v2409
    %v2418 = vtanh.pop %v2410
    %v2419 = vtanh.pop %v2411
    %v2420 = vtanh.pop %v2412
    %v2421 = vtanh.pop %v2413
    %v2422 = vtanh.pop %v2414
    %2431 = vrot.lane.b32.xlu0 %v2415, 64
    %v2432 = vpop.permute.xlu0 %2431
    %2433 = vrot.lane.b32.xlu0 %v2416, 64
    %v2434 = vpop.permute.xlu0 %2433
    %2435 = vrot.lane.b32.xlu0 %v2417, 64
    %v2436 = vpop.permute.xlu0 %2435
    %2437 = vrot.lane.b32.xlu0 %v2418, 64
    %v2438 = vpop.permute.xlu0 %2437
    %2439 = vrot.lane.b32.xlu0 %v2419, 64
    %v2440 = vpop.permute.xlu0 %2439
    %2441 = vrot.lane.b32.xlu0 %v2420, 64
    %v2442 = vpop.permute.xlu0 %2441
    %2443 = vrot.lane.b32.xlu0 %v2421, 64
    %v2444 = vpop.permute.xlu0 %2443
    %2445 = vrot.lane.b32.xlu0 %v2422, 64
    %v2446 = vpop.permute.xlu0 %2445
    %v2455 = vmul.f32 %v2280, %v2432
    %v2456 = vmul.f32 %v2282, %v2434
    %v2457 = vmul.f32 %v2284, %v2436
    %v2458 = vmul.f32 %v2286, %v2438
    %v2459 = vmul.f32 %v2288, %v2440
    %v2460 = vmul.f32 %v2290, %v2442
    %v2461 = vmul.f32 %v2292, %v2444
    %v2462 = vmul.f32 %v2294, %v2446
    %v2463 = vpack.c.bf16 %v2455, %v2455
    %v2464 = vpack.c.bf16 %v2456, %v2456
    %v2465 = vpack.c.bf16 %v2457, %v2457
    %v2466 = vpack.c.bf16 %v2458, %v2458
    %v2467 = vpack.c.bf16 %v2459, %v2459
    %v2468 = vpack.c.bf16 %v2460, %v2460
    %v2469 = vpack.c.bf16 %v2461, %v2461
    %v2470 = vpack.c.bf16 %v2462, %v2462
    %v2479 = vunpack.c.l.b16 %v2463
    %v2480 = vunpack.c.l.b16 %v2464
    %v2481 = vunpack.c.l.b16 %v2465
    %v2482 = vunpack.c.l.b16 %v2466
    %v2483 = vunpack.c.l.b16 %v2467
    %v2484 = vunpack.c.l.b16 %v2468
    %v2485 = vunpack.c.l.b16 %v2469
    %v2486 = vunpack.c.l.b16 %v2470
    %v2487 = vrot.slane %v2479, 6
    %v2488 = vrot.slane %v2480, 5
    %v2489 = vsel %vm537, %v2488, %v2487
    %v2490 = vrot.slane %v2481, 4
    %v2491 = vsel %vm540, %v2490, %v2489
    %v2492 = vrot.slane %v2482, 3
    %v2493 = vsel %vm543, %v2492, %v2491
    %v2494 = vrot.slane %v2483, 2
    %v2495 = vsel %vm546, %v2494, %v2493
    %v2496 = vrot.slane %v2484, 1
    %v2497 = vsel %vm549, %v2496, %v2495
    %v2498 = vsel %vm552, %v2485, %v2497
    %v2499 = vrot.slane %v2486, 7
    %v2500 = vsel %vm555, %v2499, %v2498
    %v2501 = vpack.c.b16 %v2500, %v2500
    %2502 = vrot.lane.b32.xlu0 %v2501, 32
    %v2503 = vpop.permute.xlu0 %2502
    %v2505 = vsel %vm252, %v2503, 0
    %2507 = vmatprep.subr.bf16.mxu0 0
    %2508 = vmatpush1.bf16.msra.mxu0 %v248
    %2509 = vmatprep.subr.bf16.mxu0 0
    %2510 = vmatpush1.bf16.msra.mxu0 %v249
    %2511 = vmatprep.subr.bf16.mxu0 0
    %2512 = vmatpush1.bf16.msra.mxu0 0
    %2513 = vmatprep.subr.bf16.mxu0 0
    %2514 = vmatpush1.bf16.msra.mxu0 0
    %2515 = vmatprep.subr.bf16.mxu0 0
    %2516 = vmatpush1.bf16.msra.mxu0 0
    %2517 = vmatprep.subr.bf16.mxu0 0
    %2518 = vmatpush1.bf16.msra.mxu0 0
    %2519 = vmatprep.subr.bf16.mxu0 0
    %2520 = vmatpush1.bf16.msra.mxu0 0
    %2521 = vmatprep.subr.bf16.mxu0 0
    %2522 = vmatpush1.bf16.msra.mxu0 0
    %2523 = vmatprep.subr.bf16.mxu0 0
    %2524 = vmatpush1.bf16.msra.mxu0 0
    %2525 = vmatprep.subr.bf16.mxu0 0
    %2526 = vmatpush1.bf16.msra.mxu0 0
    %2527 = vmatprep.subr.bf16.mxu0 0
    %2528 = vmatpush1.bf16.msra.mxu0 0
    %2529 = vmatprep.subr.bf16.mxu0 0
    %2530 = vmatpush1.bf16.msra.mxu0 0
    %2531 = vmatprep.subr.bf16.mxu0 0
    %2532 = vmatpush1.bf16.msra.mxu0 0
    %2533 = vmatprep.subr.bf16.mxu0 0
    %2534 = vmatpush1.bf16.msra.mxu0 0
    %2535 = vmatprep.subr.bf16.mxu0 0
    %2536 = vmatpush1.bf16.msra.mxu0 0
    %2537 = vmatprep.subr.bf16.mxu0 0
    %2538 = vmatpush1.bf16.msra.mxu0 0
    %2539 = vmatprep.mubr.bf16.mxu0 0
    %2540 = vmatmul.mubr.bf16.gmra.mrb[0].mxu0 %v2505
    %v2541 = vpop.f32.mrb[0].mxu0
    %v2542 = vadd.f32 0.0, %v2541
    %v2543 = vpop.f32.mrb[0].mxu0
    %v2544 = vpop.f32.mrb[0].mxu0
    %v2545 = vpop.f32.mrb[0].mxu0
    %2546 = vdwg.mxu0
    %v2548 = vrot.slane %v2542, 1
    %v2549 = vrot.slane %v2542, 2
    %v2550 = vrot.slane %v2542, 3
    %v2551 = vrot.slane %v2542, 4
    %v2552 = vrot.slane %v2542, 5
    %v2553 = vrot.slane %v2542, 6
    %v2554 = vrot.slane %v2542, 7
    %v2563 = vadd.f32 %v206, %v2548
    %v2564 = vadd.f32 %v209, %v2549
    %v2565 = vadd.f32 %v214, %v2550
    %v2566 = vadd.f32 %v217, %v2551
    %v2567 = vadd.f32 %v222, %v2552
    %v2568 = vadd.f32 %v225, %v2553
    %v2569 = vadd.f32 %v230, %v2554
    %v2570 = vadd.f32 %v233, %v2542
    %v2571 = vxor.u32 %v2563, 2147483648
    %v2572 = vxor.u32 %v2564, 2147483648
    %v2573 = vxor.u32 %v2565, 2147483648
    %v2574 = vxor.u32 %v2566, 2147483648
    %v2575 = vxor.u32 %v2567, 2147483648
    %v2576 = vxor.u32 %v2568, 2147483648
    %v2577 = vxor.u32 %v2569, 2147483648
    %v2578 = vxor.u32 %v2570, 2147483648
    %v2579 = vmul.f32 %v2571, 1.442695
    %v2580 = vpow.pop %v2579
    %v2581 = vmul.f32 %v2572, 1.442695
    %v2582 = vpow.pop %v2581
    %v2583 = vmul.f32 %v2573, 1.442695
    %v2584 = vpow.pop %v2583
    %v2585 = vmul.f32 %v2574, 1.442695
    %v2586 = vpow.pop %v2585
    %v2587 = vmul.f32 %v2575, 1.442695
    %v2588 = vpow.pop %v2587
    %v2589 = vmul.f32 %v2576, 1.442695
    %v2590 = vpow.pop %v2589
    %v2591 = vmul.f32 %v2577, 1.442695
    %v2592 = vpow.pop %v2591
    %v2593 = vmul.f32 %v2578, 1.442695
    %v2594 = vpow.pop %v2593
    %v2595 = vadd.f32 %v2580, 1.0
    %v2596 = vadd.f32 %v2582, 1.0
    %v2597 = vadd.f32 %v2584, 1.0
    %v2598 = vadd.f32 %v2586, 1.0
    %v2599 = vadd.f32 %v2588, 1.0
    %v2600 = vadd.f32 %v2590, 1.0
    %v2601 = vadd.f32 %v2592, 1.0
    %v2602 = vadd.f32 %v2594, 1.0
    %v2603 = vrcp.pop %v2595
    %v2604 = vmul.f32 1.0, %v2603
    %v2605 = vrcp.pop %v2596
    %v2606 = vmul.f32 1.0, %v2605
    %v2607 = vrcp.pop %v2597
    %v2608 = vmul.f32 1.0, %v2607
    %v2609 = vrcp.pop %v2598
    %v2610 = vmul.f32 1.0, %v2609
    %v2611 = vrcp.pop %v2599
    %v2612 = vmul.f32 1.0, %v2611
    %v2613 = vrcp.pop %v2600
    %v2614 = vmul.f32 1.0, %v2613
    %v2615 = vrcp.pop %v2601
    %v2616 = vmul.f32 1.0, %v2615
    %v2617 = vrcp.pop %v2602
    %v2618 = vmul.f32 1.0, %v2617
    %v2619 = vtanh.pop %v2563
    %v2620 = vtanh.pop %v2564
    %v2621 = vtanh.pop %v2565
    %v2622 = vtanh.pop %v2566
    %v2623 = vtanh.pop %v2567
    %v2624 = vtanh.pop %v2568
    %v2625 = vtanh.pop %v2569
    %v2626 = vtanh.pop %v2570
    %v2635 = vrot.slane %v2407, 7
    %v2636 = vrot.slane %v2408, 7
    %v2637 = vrot.slane %v2409, 7
    %v2638 = vrot.slane %v2410, 7
    %v2639 = vrot.slane %v2411, 7
    %v2640 = vrot.slane %v2412, 7
    %v2641 = vrot.slane %v2413, 7
    %v2642 = vrot.slane %v2414, 7
    %v2651 = vmul.f32 %v2604, %v2635
    %v2652 = vmul.f32 %v2606, %v2636
    %v2653 = vmul.f32 %v2608, %v2637
    %v2654 = vmul.f32 %v2610, %v2638
    %v2655 = vmul.f32 %v2612, %v2639
    %v2656 = vmul.f32 %v2614, %v2640
    %v2657 = vmul.f32 %v2616, %v2641
    %v2658 = vmul.f32 %v2618, %v2642
    %2667 = vrot.lane.b32.xlu0 %v2619, 64
    %v2668 = vpop.permute.xlu0 %2667
    %2669 = vrot.lane.b32.xlu0 %v2620, 64
    %v2670 = vpop.permute.xlu0 %2669
    %2671 = vrot.lane.b32.xlu0 %v2621, 64
    %v2672 = vpop.permute.xlu0 %2671
    %2673 = vrot.lane.b32.xlu0 %v2622, 64
    %v2674 = vpop.permute.xlu0 %2673
    %2675 = vrot.lane.b32.xlu0 %v2623, 64
    %v2676 = vpop.permute.xlu0 %2675
    %2677 = vrot.lane.b32.xlu0 %v2624, 64
    %v2678 = vpop.permute.xlu0 %2677
    %2679 = vrot.lane.b32.xlu0 %v2625, 64
    %v2680 = vpop.permute.xlu0 %2679
    %2681 = vrot.lane.b32.xlu0 %v2626, 64
    %v2682 = vpop.permute.xlu0 %2681
    %v2691 = vmul.f32 %v2604, %v2668
    %v2692 = vmul.f32 %v2606, %v2670
    %v2693 = vmul.f32 %v2608, %v2672
    %v2694 = vmul.f32 %v2610, %v2674
    %v2695 = vmul.f32 %v2612, %v2676
    %v2696 = vmul.f32 %v2614, %v2678
    %v2697 = vmul.f32 %v2616, %v2680
    %v2698 = vmul.f32 %v2618, %v2682
    %2707 = vrot.lane.b32.xlu0 %v2691, 32
    %v2708 = vpop.permute.xlu0 %2707
    %2709 = vrot.lane.b32.xlu0 %v2692, 32
    %v2710 = vpop.permute.xlu0 %2709
    %2711 = vrot.lane.b32.xlu0 %v2693, 32
    %v2712 = vpop.permute.xlu0 %2711
    %2713 = vrot.lane.b32.xlu0 %v2694, 32
    %v2714 = vpop.permute.xlu0 %2713
    %2715 = vrot.lane.b32.xlu0 %v2695, 32
    %v2716 = vpop.permute.xlu0 %2715
    %2717 = vrot.lane.b32.xlu0 %v2696, 32
    %v2718 = vpop.permute.xlu0 %2717
    %2719 = vrot.lane.b32.xlu0 %v2697, 32
    %v2720 = vpop.permute.xlu0 %2719
    %2721 = vrot.lane.b32.xlu0 %v2698, 32
    %v2722 = vpop.permute.xlu0 %2721
    %v2731 = vadd.f32 %v2651, %v2708
    %v2732 = vadd.f32 %v2652, %v2710
    %v2733 = vadd.f32 %v2653, %v2712
    %v2734 = vadd.f32 %v2654, %v2714
    %v2735 = vadd.f32 %v2655, %v2716
    %v2736 = vadd.f32 %v2656, %v2718
    %v2737 = vadd.f32 %v2657, %v2720
    %v2738 = vadd.f32 %v2658, %v2722
    %v2739 = vtanh.pop %v2731
    %v2740 = vtanh.pop %v2732
    %v2741 = vtanh.pop %v2733
    %v2742 = vtanh.pop %v2734
    %v2743 = vtanh.pop %v2735
    %v2744 = vtanh.pop %v2736
    %v2745 = vtanh.pop %v2737
    %v2746 = vtanh.pop %v2738
    %2755 = vrot.lane.b32.xlu0 %v2739, 64
    %v2756 = vpop.permute.xlu0 %2755
    %2757 = vrot.lane.b32.xlu0 %v2740, 64
    %v2758 = vpop.permute.xlu0 %2757
    %2759 = vrot.lane.b32.xlu0 %v2741, 64
    %v2760 = vpop.permute.xlu0 %2759
    %2761 = vrot.lane.b32.xlu0 %v2742, 64
    %v2762 = vpop.permute.xlu0 %2761
    %2763 = vrot.lane.b32.xlu0 %v2743, 64
    %v2764 = vpop.permute.xlu0 %2763
    %2765 = vrot.lane.b32.xlu0 %v2744, 64
    %v2766 = vpop.permute.xlu0 %2765
    %2767 = vrot.lane.b32.xlu0 %v2745, 64
    %v2768 = vpop.permute.xlu0 %2767
    %2769 = vrot.lane.b32.xlu0 %v2746, 64
    %v2770 = vpop.permute.xlu0 %2769
    %v2779 = vmul.f32 %v2604, %v2756
    %v2780 = vmul.f32 %v2606, %v2758
    %v2781 = vmul.f32 %v2608, %v2760
    %v2782 = vmul.f32 %v2610, %v2762
    %v2783 = vmul.f32 %v2612, %v2764
    %v2784 = vmul.f32 %v2614, %v2766
    %v2785 = vmul.f32 %v2616, %v2768
    %v2786 = vmul.f32 %v2618, %v2770
    %v2787 = vld [vmem:[%s4] sm:$0x1]
    %v2788 = vld [vmem:[#allocation2] sm:$0x1]
    %2790 = vset.pattern.permute.xlu0 0
    %2791 = vperm.xlu0 %2790, %v2788
    %v2792 = vpop.permute.xlu0 %2791
    %v2794 = vlaneseq
    %v2795 = vshrl.u32 %v2794, 7
    %v2796 = vsub.s32 0, %v2795
    %v2797 = vrot.slane %v2792, %v2796
    %v2806 = vrot.slane %v2779, 7
    %v2807 = vrot.slane %v2780, 6
    %v2808 = vsel %vm537, %v2807, %v2806
    %v2809 = vrot.slane %v2781, 5
    %v2810 = vsel %vm540, %v2809, %v2808
    %v2811 = vrot.slane %v2782, 4
    %v2812 = vsel %vm543, %v2811, %v2810
    %v2813 = vrot.slane %v2783, 3
    %v2814 = vsel %vm546, %v2813, %v2812
    %v2815 = vrot.slane %v2784, 2
    %v2816 = vsel %vm549, %v2815, %v2814
    %v2817 = vrot.slane %v2785, 1
    %v2818 = vsel %vm552, %v2817, %v2816
    %v2819 = vsel %vm555, %v2786, %v2818
    %2820 = vrot.lane.b32.xlu0 %v2819, 32
    %v2821 = vpop.permute.xlu0 %2820
    %v2823 = vsel %vm252, %v2787, 0
    %v2825 = vsel %vm252, %v2821, 0
    %2827 = vmatprep.subr.mxu0 0.0
    %2828 = vmatpush1.xpose.msra.mxu0 %v2825
    %2829 = vmatprep.subr.mxu0 0.0
    %2830 = vmatpush1.xpose.msra.mxu0 0.0
    %2831 = vmatprep.subr.mxu0 0.0
    %2832 = vmatpush1.xpose.msra.mxu0 0.0
    %2833 = vmatprep.subr.mxu0 0.0
    %2834 = vmatpush1.xpose.msra.mxu0 0.0
    %2835 = vmatprep.subr.mxu0 0.0
    %2836 = vmatpush1.xpose.msra.mxu0 0.0
    %2837 = vmatprep.subr.mxu0 0.0
    %2838 = vmatpush1.xpose.msra.mxu0 0.0
    %2839 = vmatprep.subr.mxu0 0.0
    %2840 = vmatpush1.xpose.msra.mxu0 0.0
    %2841 = vmatprep.subr.mxu0 0.0
    %2842 = vmatpush1.xpose.msra.mxu0 0.0
    %2843 = vmatprep.subr.mxu0 0.0
    %2844 = vmatpush1.xpose.msra.mxu0 0.0
    %2845 = vmatprep.subr.mxu0 0.0
    %2846 = vmatpush1.xpose.msra.mxu0 0.0
    %2847 = vmatprep.subr.mxu0 0.0
    %2848 = vmatpush1.xpose.msra.mxu0 0.0
    %2849 = vmatprep.subr.mxu0 0.0
    %2850 = vmatpush1.xpose.msra.mxu0 0.0
    %2851 = vmatprep.subr.mxu0 0.0
    %2852 = vmatpush1.xpose.msra.mxu0 0.0
    %2853 = vmatprep.subr.mxu0 0.0
    %2854 = vmatpush1.xpose.msra.mxu0 0.0
    %2855 = vmatprep.subr.mxu0 0.0
    %2856 = vmatpush1.xpose.msra.mxu0 0.0
    %2857 = vmatprep.subr.mxu0 0.0
    %2858 = vmatpush1.xpose.msra.mxu0 0.0
    %2859 = vmatprep.subr.mxu0 0.0
    %2860 = vmatpush1.xpose.msra.mxu0 0.0
    %2861 = vmatprep.subr.mxu0 0.0
    %2862 = vmatpush1.xpose.msra.mxu0 0.0
    %2863 = vmatprep.subr.mxu0 0.0
    %2864 = vmatpush1.xpose.msra.mxu0 0.0
    %2865 = vmatprep.subr.mxu0 0.0
    %2866 = vmatpush1.xpose.msra.mxu0 0.0
    %2867 = vmatprep.subr.mxu0 0.0
    %2868 = vmatpush1.xpose.msra.mxu0 0.0
    %2869 = vmatprep.subr.mxu0 0.0
    %2870 = vmatpush1.xpose.msra.mxu0 0.0
    %2871 = vmatprep.subr.mxu0 0.0
    %2872 = vmatpush1.xpose.msra.mxu0 0.0
    %2873 = vmatprep.subr.mxu0 0.0
    %2874 = vmatpush1.xpose.msra.mxu0 0.0
    %2875 = vmatprep.subr.mxu0 0.0
    %2876 = vmatpush1.xpose.msra.mxu0 0.0
    %2877 = vmatprep.subr.mxu0 0.0
    %2878 = vmatpush1.xpose.msra.mxu0 0.0
    %2879 = vmatprep.subr.mxu0 0.0
    %2880 = vmatpush1.xpose.msra.mxu0 0.0
    %2881 = vmatprep.subr.mxu0 0.0
    %2882 = vmatpush1.xpose.msra.mxu0 0.0
    %2883 = vmatprep.subr.mxu0 0.0
    %2884 = vmatpush1.xpose.msra.mxu0 0.0
    %2885 = vmatprep.subr.mxu0 0.0
    %2886 = vmatpush1.xpose.msra.mxu0 0.0
    %2887 = vmatprep.subr.mxu0 0.0
    %2888 = vmatpush1.xpose.msra.mxu0 0.0
    %2889 = vmatprep.subr.mxu0 0.0
    %2890 = vmatpush1.xpose.msra.mxu0 0.0
    %2891 = vmatprep.mubr.f32.mxu0 0.0
    %2892 = vmatmul.mubr.f32.gmra.mrb[0].mxu0 %v2823
    %v2893 = vpop.f32.mrb[0].mxu0
    %v2894 = vadd.f32 %v2797, %v2893
    %v2895 = vpop.f32.mrb[0].mxu0
    %2896 = vdwg.mxu0
    %v2897 = vxor.u32 %v2894, 2147483648
    %v2898 = vmul.f32 %v2897, 1.442695
    %v2899 = vpow.pop %v2898
    %v2900 = vadd.f32 %v2899, 1.0
    %v2901 = vrcp.pop %v2900
    %v2902 = vmul.f32 1.0, %v2901
    %vm2903 = vcmask 57344
    %2904 = vst.msk [vmem:[#allocation9] sm:$0x1] %vm2903, %v2902
    // Predicated region
    $region38: #{tpu_custom_call.1} parent=1 // pred_check
      _
    $region39: #{tpu_custom_call.1} parent=1 // pred_check_branch
      %2906 = sbr.rel (0) target = $region41
    $region40: #{tpu_custom_call.1} parent=1 // pred_region
      %s2908 = ssub.s32 16, 16
      %2909 = vsyncadd [#allocation5], %s2908
      %s2911 = sshll.u32 [#allocation9], 4
      %s2912 = int_to_ptr.vmem [resolvable:$true] %s2911
      %2914 = dma.vmem_to_hbm [thread:$0]  %s2912, 16, %s6, [#allocation5]
    $region41: #{tpu_custom_call.1} parent=1 // pred_fallthru
      _
    // Predicated region
    $region42: #{tpu_custom_call.1} parent=1 // pred_check
      _
    $region43: #{tpu_custom_call.1} parent=1 // pred_check_branch
      %2916 = sbr.rel (0) target = $region45
    $region44: #{tpu_custom_call.1} parent=1 // pred_region
      %2917 = dma.done [#allocation5], 16
    $region45: #{tpu_custom_call.1} parent=1 // pred_fallthru
      _
    %2918 = vsyncpa [#allocation4], 1
    %2919 = vsyncpa [#allocation7], 1
    %2920 = vsyncpa [#allocation5], 1

</llo_original>
